<compile_context>
chip_gen: v7x
topology: tpu7x:2x2x1
jax: 0.10.0
libtpu: 0.0.40
codegen_flags: <defaults>
</compile_context>

<pallas_src>
import functools
import math

import jax
import jax.numpy as jnp
import numpy as np
from jax.experimental import pallas as pl
from jax.experimental.pallas import tpu as pltpu


# ----------------------------- Pallas kernel --------------------------------


def _skconv_kernel(M, H, W, C, pad_max, L0, chunk, x_ref, *rest):
    """Fused SKConv forward for one batch element (lane-packed layout)."""
    w_refs = rest[:M]                      # per branch: (ki*ki, W*C) tiled weights
    b_ref = rest[M]                        # (M, W*C)   tiled conv biases
    fcw_ref = rest[M + 1]                  # (C, d)     fc weight (transposed)
    fcb_ref = rest[M + 2]                  # (1, d)     fc bias
    w2_ref = rest[M + 3]                   # (M, d, C)  branch-fc weights (un-tiled)
    b2_ref = rest[M + 4]                   # (M, C)     branch-fc biases  (un-tiled)
    out_ref = rest[M + 5]                  # (1, H, W*C) output block
    xp_ref = rest[M + 6]                   # VMEM scratch (H+2*pad, padded lanes)
    feas_ref = rest[M + 7]                 # VMEM scratch (M, H, W*C) branch maps
    att_ref = rest[M + 8]                  # VMEM scratch (M, W*C) tiled attention

    WC = W * C
    Hpp = H + 2 * pad_max
    rl = L0 - pad_max * C                  # lowest lane any branch reads
    rh = L0 + WC + pad_max * C             # one past the highest lane read

    # ---- zero only the padding border that taps read; interior rewritten ----
    # (per step, not once, so it stays correct under megacore batch splitting)
    xp_ref[0:pad_max, rl:rh] = jnp.zeros((pad_max, rh - rl), jnp.float32)
    xp_ref[pad_max + H:Hpp, rl:rh] = jnp.zeros((pad_max, rh - rl), jnp.float32)
    xp_ref[pad_max:pad_max + H, rl:L0] = jnp.zeros((H, L0 - rl), jnp.float32)
    xp_ref[pad_max:pad_max + H, L0 + WC:rh] = jnp.zeros((H, rh - L0 - WC),
                                                        jnp.float32)
    # interior copy-in; L0 is 128-aligned so this is a dense lane store
    xp_ref[pad_max:pad_max + H, L0:L0 + WC] = x_ref[0]

    chunks = [(c0, min(chunk, WC - c0)) for c0 in range(0, WC, chunk)]
    ones_h = jnp.ones((1, H), jnp.float32)         # for the MXU H-reduction

    # ---- stage 1: M depthwise convs + bias + ReLU (lane-chunked so the
    #      accumulator stays in vregs) + GAP partial sums --------------------
    fea_s = jnp.zeros((1, C), jnp.float32)
    for (c0, csz) in chunks:
        colsum_c = jnp.zeros((1, csz), jnp.float32)
        for i in range(M):
            ki = 3 + 2 * i
            pi = 1 + i
            bias = b_ref[i:i + 1, c0:c0 + csz]                   # (1, csz)
            acc = jnp.zeros((H, csz), jnp.float32)
            for dw in range(ki):
                # one lane shift per dw, reused for all dh taps
                ls = L0 + (dw - pi) * C + c0
                col = xp_ref[:, ls:ls + csz]                     # (Hpp, csz)
                for dh in range(ki):
                    tap = dh * ki + dw
                    wrow = w_refs[i][tap:tap + 1, c0:c0 + csz]   # (1, csz)
                    rs = pad_max - pi + dh
                    acc = acc + col[rs:rs + H, :] * wrow
            fea = jnp.maximum(acc + bias, 0.0)                   # conv+bias+ReLU
            feas_ref[i, :, c0:c0 + csz] = fea                    # stays in VMEM
            # GAP partial: H-reduction as a ones-row matmul on the idle MXU
            colsum_c = colsum_c + jnp.dot(ones_h, fea,
                                          preferred_element_type=jnp.float32)
        # fold the W groups inside this chunk with a log2-depth tree
        parts = [colsum_c[:, g * C:(g + 1) * C] for g in range(csz // C)]
        while len(parts) > 1:
            nxt = [parts[j] + parts[j + 1]
                   for j in range(0, len(parts) - 1, 2)]
            if len(parts) % 2:
                nxt.append(parts[-1])
            parts = nxt
        fea_s = fea_s + parts[0]
    fea_s = fea_s * (1.0 / float(H * W))                         # (1, C) GAP

    # ---- stage 2: excitation + softmax over branches in the (1, C) domain --
    z = jnp.dot(fea_s, fcw_ref[...],
                preferred_element_type=jnp.float32) + fcb_ref[...]     # (1, d)
    logits = [jnp.dot(z, w2_ref[m], preferred_element_type=jnp.float32)
              + b2_ref[m:m + 1, :] for m in range(M)]                  # (1, C)
    mx = logits[0]
    for m in range(1, M):
        mx = jnp.maximum(mx, logits[m])
    exps = [jnp.exp(l - mx) for l in logits]
    den = exps[0]
    for m in range(1, M):
        den = den + exps[m]
    inv = pl.reciprocal(den, approx=True)          # EUP slot (idle)
    inv = inv * (2.0 - den * inv)                  # one NR step: err ~ eps^2

    # broadcast each branch's (1, C) attention to (1, W*C) with log2(W)
    # doubling copies inside a tiny VMEM row (no weight lane-tiling needed)
    for m in range(M):
        att_ref[m:m + 1, 0:C] = exps[m] * inv
        cov = 1
        while cov * 2 <= W:
            att_ref[m:m + 1, cov * C:2 * cov * C] = att_ref[m:m + 1, 0:cov * C]
            cov *= 2
        if cov < W:
            rem = W - cov
            att_ref[m:m + 1, cov * C:(cov + rem) * C] = \
                att_ref[m:m + 1, 0:rem * C]

    # ---- stage 3: attention-weighted branch sum (lane-chunked) -------------
    for (c0, csz) in chunks:
        out = jnp.zeros((H, csz), jnp.float32)
        for m in range(M):
            out = out + feas_ref[m, :, c0:c0 + csz] * att_ref[m:m + 1,
                                                              c0:c0 + csz]
        out_ref[0, :, c0:c0 + csz] = out.astype(out_ref.dtype)


# ------------------------------- wrapper -------------------------------------


def _lane_chunk(WC, C):
    """Lane-chunk size: multiple of C (weight tiling period) and of 128."""
    if WC <= 512:
        return WC
    base = (C * 128) // math.gcd(C, 128)           # lcm(C, 128)
    n = max(1, 512 // base)
    return min(WC, n * base)


def skconv_forward(x_nchw, params):
    """SKConv forward. x_nchw: (B, C, H, W) float32 -> (B, C, H, W) float32."""
    M = len(params["conv_w"])
    B, C, H, W = x_nchw.shape
    d = params["fc_w"].shape[0]
    pad_max = M                            # padding of the largest branch kernel
    WC = W * C
    Hpp = H + 2 * pad_max
    # interior copy-in offset rounded up to a 128-lane boundary (dense store)
    L0 = ((pad_max * C + 127) // 128) * 128
    WpL = ((L0 + WC + pad_max * C + 127) // 128) * 128
    chunk = _lane_chunk(WC, C)

    # NCHW -> lane-packed (B, H, W*C); the minor-dim merge is a free reshape.
    x2d = jnp.transpose(x_nchw, (0, 2, 3, 1)).astype(jnp.float32).reshape(B, H, WC)

    # Depthwise weights (C, 1, ki, ki) -> (ki*ki, W*C): per-tap channel weights
    # tiled along the lane axis so each tap is a single row broadcast in-kernel
    # (small: ~O(ki^2 * W*C) floats per branch).
    conv_w_tiled = []
    for i in range(M):
        ki = 3 + 2 * i
        w = jnp.transpose(params["conv_w"][i][:, 0], (1, 2, 0)).reshape(ki * ki, C)
        conv_w_tiled.append(jnp.tile(w, (1, W)))                       # (ki*ki, WC)
    conv_b_tiled = jnp.stack(
        [jnp.tile(b.reshape(1, C), (1, W)).reshape(WC) for b in params["conv_b"]], 0)

    fc_wT = jnp.transpose(params["fc_w"])                              # (C, d)
    fc_b = params["fc_b"].reshape(1, d)
    # Branch-fc weights/biases kept UN-tiled (review item): (M, d, C) / (M, C).
    w2 = jnp.stack([jnp.transpose(w) for w in params["fcs_w"]], 0)     # (M, d, C)
    b2 = jnp.stack(params["fcs_b"], 0)                                 # (M, C)

    # TODO(synk): mark the constant-index weight specs with
    # pipeline_mode=pl.Buffered(1) once validated on the target jax version,
    # to drop the second VMEM copy of weights whose index_map never changes.
    in_specs = [pl.BlockSpec((1, H, WC), lambda b: (b, 0, 0))]
    in_specs += [pl.BlockSpec(conv_w_tiled[i].shape, lambda b: (0, 0))
                 for i in range(M)]
    in_specs += [pl.BlockSpec((M, WC), lambda b: (0, 0)),
                 pl.BlockSpec((C, d), lambda b: (0, 0)),
                 pl.BlockSpec((1, d), lambda b: (0, 0)),
                 pl.BlockSpec((M, d, C), lambda b: (0, 0, 0)),
                 pl.BlockSpec((M, C), lambda b: (0, 0))]

    out2d = pl.pallas_call(
        functools.partial(_skconv_kernel, M, H, W, C, pad_max, L0, chunk),
        out_shape=jax.ShapeDtypeStruct((B, H, WC), jnp.float32),
        grid=(B,),
        in_specs=in_specs,
        out_specs=pl.BlockSpec((1, H, WC), lambda b: (b, 0, 0)),
        scratch_shapes=[pltpu.VMEM((Hpp, WpL), jnp.float32),    # padded input
                        pltpu.VMEM((M, H, WC), jnp.float32),    # branch maps (f32)
                        pltpu.VMEM((M, WC), jnp.float32)],      # tiled attention
        compiler_params=pltpu.CompilerParams(
            dimension_semantics=("parallel",),                  # batch over TCs
            vmem_limit_bytes=48 * 1024 * 1024),                 # v7x headroom
    )(x2d, *conv_w_tiled, conv_b_tiled, fc_wT, fc_b, w2, b2)

    # TODO(synk): at production sizes (e.g. C=256, H=W=56) add an H-tile grid
    # axis (pad_max halo rows + GAP partial-sum carry, then a weighting pass)
    # so small batches still give >=4-8 pipeline steps and v7x's 64 MiB VMEM
    # fits comfortably; verify on v7x that the batch axis actually shards
    # across both TensorCores (fall back to CORE_PARALLEL / core_map if not).
    return jnp.transpose(out2d.reshape(B, H, W, C), (0, 3, 1, 2))      # back to NCHW


# ------------------------ parameters / reference -----------------------------


def init_params(key, C, M, d):
    """Deterministic synthetic parameters matching SKConv.__init__ shapes."""
    ks = iter(jax.random.split(key, 64))
    conv_w, conv_b = [], []
    for i in range(M):
        ki = 3 + 2 * i
        # weight_norm(Conv2d): v (C,1,ki,ki), g (C,) ; effective w = g * v/||v||
        v = jax.random.normal(next(ks), (C, 1, ki, ki), jnp.float32) * 0.2
        g = 1.0 + 0.1 * jax.random.normal(next(ks), (C,), jnp.float32)
        nrm = jnp.sqrt(jnp.sum(v * v, axis=(1, 2, 3), keepdims=True))
        conv_w.append(g[:, None, None, None] * v / nrm)
        conv_b.append(0.1 * jax.random.normal(next(ks), (C,), jnp.float32))
    fc_w = jax.random.normal(next(ks), (d, C), jnp.float32) / np.sqrt(C)
    fc_b = 0.1 * jax.random.normal(next(ks), (d,), jnp.float32)
    fcs_w, fcs_b = [], []
    for _ in range(M):
        fcs_w.append(jax.random.normal(next(ks), (C, d), jnp.float32)
                     / np.sqrt(d))
        fcs_b.append(0.1 * jax.random.normal(next(ks), (C,), jnp.float32))
    return dict(conv_w=conv_w, conv_b=conv_b, fc_w=fc_w, fc_b=fc_b,
                fcs_w=fcs_w, fcs_b=fcs_b)


def skconv_ref(x, params):
    """Pure-JAX reference mirroring the PyTorch forward (NCHW)."""
    M = len(params["conv_w"])
    B, C, H, W = x.shape
    feas = []
    for i in range(M):
        pi = 1 + i
        y = jax.lax.conv_general_dilated(
            x, params["conv_w"][i], window_strides=(1, 1),
            padding=[(pi, pi), (pi, pi)],
            dimension_numbers=("NCHW", "OIHW", "NCHW"),
            feature_group_count=C)
        y = jnp.maximum(y + params["conv_b"][i][None, :, None, None], 0.0)
        feas.append(y)
    feas = jnp.stack(feas, axis=1)                       # (B, M, C, H, W)
    fea_U = feas.sum(axis=1)
    fea_s = fea_U.mean(axis=(-2, -1))                    # (B, C)
    z = fea_s @ params["fc_w"].T + params["fc_b"]
    vs = jnp.stack([z @ params["fcs_w"][i].T + params["fcs_b"][i]
                    for i in range(M)], axis=1)          # (B, M, C)
    att = jax.nn.softmax(vs, axis=1)
    return (feas * att[..., None, None]).sum(axis=1)


if __name__ == "__main__":
    B, C, H, W = 2, 8, 16, 16
    M, r, L = 2, 2, 32
    d = max(C // r, L)

    key = jax.random.PRNGKey(0)
    kx, kp = jax.random.split(key)
    x = jax.random.normal(kx, (B, C, H, W), jnp.float32)
    params = init_params(kp, C, M, d)

    out = skconv_forward(x, params)
    out = jax.block_until_ready(out)

    ref = skconv_ref(x, params)
    assert out.shape == (B, C, H, W)
    max_err = float(jnp.max(jnp.abs(out - ref)))
    assert max_err < 2e-3, f"mismatch vs reference, max abs err = {max_err}"
    print("KERNEL_OK")
</pallas_src>

<mosaic_0001>
module attributes {stable_mosaic.version = 11 : i64} {
  func.func @_skconv_kernel(%arg0: i32, %arg1: memref<1x16x128xf32, #tpu.memory_space<vmem>>, %arg2: memref<9x128xf32, #tpu.memory_space<vmem>>, %arg3: memref<25x128xf32, #tpu.memory_space<vmem>>, %arg4: memref<2x128xf32, #tpu.memory_space<vmem>>, %arg5: memref<8x32xf32, #tpu.memory_space<vmem>>, %arg6: memref<1x32xf32, #tpu.memory_space<vmem>>, %arg7: memref<2x32x8xf32, #tpu.memory_space<vmem>>, %arg8: memref<2x8xf32, #tpu.memory_space<vmem>>, %arg9: memref<1x16x128xf32, #tpu.memory_space<vmem>>, %arg10: memref<20x384xf32, #tpu.memory_space<vmem>>, %arg11: memref<2x16x128xf32, #tpu.memory_space<vmem>>, %arg12: memref<2x128xf32, #tpu.memory_space<vmem>>) attributes {dimension_semantics = [#tpu.dimension_semantics<parallel>], iteration_bounds = array<i64: 2>, scalar_prefetch = 0 : i64, scratch_operands = 3 : i64, tpu.core_type = #tpu.core_type<tc>, window_params = [{transform_indices = @transform_0, window_bounds = array<i64: 1, 16, 128>}, {pipeline_mode = #tpu.pipeline_mode<synchronous>, transform_indices = @transform_1, window_bounds = array<i64: 9, 128>}, {pipeline_mode = #tpu.pipeline_mode<synchronous>, transform_indices = @transform_2, window_bounds = array<i64: 25, 128>}, {pipeline_mode = #tpu.pipeline_mode<synchronous>, transform_indices = @transform_3, window_bounds = array<i64: 2, 128>}, {pipeline_mode = #tpu.pipeline_mode<synchronous>, transform_indices = @transform_4, window_bounds = array<i64: 8, 32>}, {pipeline_mode = #tpu.pipeline_mode<synchronous>, transform_indices = @transform_5, window_bounds = array<i64: 1, 32>}, {pipeline_mode = #tpu.pipeline_mode<synchronous>, transform_indices = @transform_6, window_bounds = array<i64: 2, 32, 8>}, {pipeline_mode = #tpu.pipeline_mode<synchronous>, transform_indices = @transform_7, window_bounds = array<i64: 2, 8>}, {transform_indices = @transform_8, window_bounds = array<i64: 1, 16, 128>}]} {
    %cst = arith.constant 0.000000e+00 : f32
    %0 = vector.broadcast %cst : f32 to vector<2x160xf32>
    %c0 = arith.constant 0 : index
    %c112 = arith.constant 112 : index
    %1 = vector.load %arg10[%c0, %c112] : memref<20x384xf32, #tpu.memory_space<vmem>>, vector<2x160xf32>
    tpu.vector_store %arg10[%c0, %c112], %0 {strides = array<i32>} : memref<20x384xf32, #tpu.memory_space<vmem>>, vector<2x160xf32>,
    %cst_0 = arith.constant 0.000000e+00 : f32
    %2 = vector.broadcast %cst_0 : f32 to vector<2x160xf32>
    %c18 = arith.constant 18 : index
    %c112_1 = arith.constant 112 : index
    %3 = vector.load %arg10[%c18, %c112_1] : memref<20x384xf32, #tpu.memory_space<vmem>>, vector<2x160xf32>
    tpu.vector_store %arg10[%c18, %c112_1], %2 {strides = array<i32>} : memref<20x384xf32, #tpu.memory_space<vmem>>, vector<2x160xf32>,
    %cst_2 = arith.constant 0.000000e+00 : f32
    %4 = vector.broadcast %cst_2 : f32 to vector<16x16xf32>
    %c2 = arith.constant 2 : index
    %c112_3 = arith.constant 112 : index
    %5 = vector.load %arg10[%c2, %c112_3] : memref<20x384xf32, #tpu.memory_space<vmem>>, vector<16x16xf32>
    tpu.vector_store %arg10[%c2, %c112_3], %4 {strides = array<i32>} : memref<20x384xf32, #tpu.memory_space<vmem>>, vector<16x16xf32>,
    %cst_4 = arith.constant 0.000000e+00 : f32
    %6 = vector.broadcast %cst_4 : f32 to vector<16x16xf32>
    %c2_5 = arith.constant 2 : index
    %c256 = arith.constant 256 : index
    %7 = vector.load %arg10[%c2_5, %c256] : memref<20x384xf32, #tpu.memory_space<vmem>>, vector<16x16xf32>
    tpu.vector_store %arg10[%c2_5, %c256], %6 {strides = array<i32>} : memref<20x384xf32, #tpu.memory_space<vmem>>, vector<16x16xf32>,
    %c0_6 = arith.constant 0 : index
    %c0_7 = arith.constant 0 : index
    %c0_8 = arith.constant 0 : index
    %8 = vector.load %arg1[%c0_6, %c0_7, %c0_8] : memref<1x16x128xf32, #tpu.memory_space<vmem>>, vector<1x16x128xf32>
    %9 = vector.shape_cast %8 : vector<1x16x128xf32> to vector<16x128xf32>
    %c2_9 = arith.constant 2 : index
    %c128 = arith.constant 128 : index
    %10 = vector.load %arg10[%c2_9, %c128] : memref<20x384xf32, #tpu.memory_space<vmem>>, vector<16x128xf32>
    tpu.vector_store %arg10[%c2_9, %c128], %9 {strides = array<i32>} : memref<20x384xf32, #tpu.memory_space<vmem>>, vector<16x128xf32>,
    %cst_10 = arith.constant 1.000000e+00 : f32
    %11 = vector.broadcast %cst_10 : f32 to vector<1x16xf32>
    %cst_11 = arith.constant 0.000000e+00 : f32
    %12 = vector.broadcast %cst_11 : f32 to vector<1x8xf32>
    %cst_12 = arith.constant 0.000000e+00 : f32
    %13 = vector.broadcast %cst_12 : f32 to vector<1x128xf32>
    %c0_13 = arith.constant 0 : index
    %c0_14 = arith.constant 0 : index
    %14 = vector.load %arg4[%c0_13, %c0_14] : memref<2x128xf32, #tpu.memory_space<vmem>>, vector<1x128xf32>
    %cst_15 = arith.constant 0.000000e+00 : f32
    %15 = vector.broadcast %cst_15 : f32 to vector<16x128xf32>
    %c0_16 = arith.constant 0 : index
    %c120 = arith.constant 120 : index
    %16 = vector.load %arg10[%c0_16, %c120] : memref<20x384xf32, #tpu.memory_space<vmem>>, vector<20x128xf32>
    %c0_17 = arith.constant 0 : index
    %c0_18 = arith.constant 0 : index
    %17 = vector.load %arg2[%c0_17, %c0_18] : memref<9x128xf32, #tpu.memory_space<vmem>>, vector<1x128xf32>
    %18 = vector.extract_strided_slice %16 {offsets = [1, 0], sizes = [16, 128], strides = [1, 1]} : vector<20x128xf32> to vector<16x128xf32>
    %19 = vector.broadcast %17 : vector<1x128xf32> to vector<16x128xf32>
    %20 = arith.mulf %18, %19 : vector<16x128xf32>
    %21 = arith.addf %15, %20 : vector<16x128xf32>
    %c3 = arith.constant 3 : index
    %c0_19 = arith.constant 0 : index
    %22 = vector.load %arg2[%c3, %c0_19] : memref<9x128xf32, #tpu.memory_space<vmem>>, vector<1x128xf32>
    %23 = vector.extract_strided_slice %16 {offsets = [2, 0], sizes = [16, 128], strides = [1, 1]} : vector<20x128xf32> to vector<16x128xf32>
    %24 = vector.broadcast %22 : vector<1x128xf32> to vector<16x128xf32>
    %25 = arith.mulf %23, %24 : vector<16x128xf32>
    %26 = arith.addf %21, %25 : vector<16x128xf32>
    %c6 = arith.constant 6 : index
    %c0_20 = arith.constant 0 : index
    %27 = vector.load %arg2[%c6, %c0_20] : memref<9x128xf32, #tpu.memory_space<vmem>>, vector<1x128xf32>
    %28 = vector.extract_strided_slice %16 {offsets = [3, 0], sizes = [16, 128], strides = [1, 1]} : vector<20x128xf32> to vector<16x128xf32>
    %29 = vector.broadcast %27 : vector<1x128xf32> to vector<16x128xf32>
    %30 = arith.mulf %28, %29 : vector<16x128xf32>
    %31 = arith.addf %26, %30 : vector<16x128xf32>
    %c0_21 = arith.constant 0 : index
    %c128_22 = arith.constant 128 : index
    %32 = vector.load %arg10[%c0_21, %c128_22] : memref<20x384xf32, #tpu.memory_space<vmem>>, vector<20x128xf32>
    %c1 = arith.constant 1 : index
    %c0_23 = arith.constant 0 : index
    %33 = vector.load %arg2[%c1, %c0_23] : memref<9x128xf32, #tpu.memory_space<vmem>>, vector<1x128xf32>
    %34 = vector.extract_strided_slice %32 {offsets = [1, 0], sizes = [16, 128], strides = [1, 1]} : vector<20x128xf32> to vector<16x128xf32>
    %35 = vector.broadcast %33 : vector<1x128xf32> to vector<16x128xf32>
    %36 = arith.mulf %34, %35 : vector<16x128xf32>
    %37 = arith.addf %31, %36 : vector<16x128xf32>
    %c4 = arith.constant 4 : index
    %c0_24 = arith.constant 0 : index
    %38 = vector.load %arg2[%c4, %c0_24] : memref<9x128xf32, #tpu.memory_space<vmem>>, vector<1x128xf32>
    %39 = vector.extract_strided_slice %32 {offsets = [2, 0], sizes = [16, 128], strides = [1, 1]} : vector<20x128xf32> to vector<16x128xf32>
    %40 = vector.broadcast %38 : vector<1x128xf32> to vector<16x128xf32>
    %41 = arith.mulf %39, %40 : vector<16x128xf32>
    %42 = arith.addf %37, %41 : vector<16x128xf32>
    %c7 = arith.constant 7 : index
    %c0_25 = arith.constant 0 : index
    %43 = vector.load %arg2[%c7, %c0_25] : memref<9x128xf32, #tpu.memory_space<vmem>>, vector<1x128xf32>
    %44 = vector.extract_strided_slice %32 {offsets = [3, 0], sizes = [16, 128], strides = [1, 1]} : vector<20x128xf32> to vector<16x128xf32>
    %45 = vector.broadcast %43 : vector<1x128xf32> to vector<16x128xf32>
    %46 = arith.mulf %44, %45 : vector<16x128xf32>
    %47 = arith.addf %42, %46 : vector<16x128xf32>
    %c0_26 = arith.constant 0 : index
    %c136 = arith.constant 136 : index
    %48 = vector.load %arg10[%c0_26, %c136] : memref<20x384xf32, #tpu.memory_space<vmem>>, vector<20x128xf32>
    %c2_27 = arith.constant 2 : index
    %c0_28 = arith.constant 0 : index
    %49 = vector.load %arg2[%c2_27, %c0_28] : memref<9x128xf32, #tpu.memory_space<vmem>>, vector<1x128xf32>
    %50 = vector.extract_strided_slice %48 {offsets = [1, 0], sizes = [16, 128], strides = [1, 1]} : vector<20x128xf32> to vector<16x128xf32>
    %51 = vector.broadcast %49 : vector<1x128xf32> to vector<16x128xf32>
    %52 = arith.mulf %50, %51 : vector<16x128xf32>
    %53 = arith.addf %47, %52 : vector<16x128xf32>
    %c5 = arith.constant 5 : index
    %c0_29 = arith.constant 0 : index
    %54 = vector.load %arg2[%c5, %c0_29] : memref<9x128xf32, #tpu.memory_space<vmem>>, vector<1x128xf32>
    %55 = vector.extract_strided_slice %48 {offsets = [2, 0], sizes = [16, 128], strides = [1, 1]} : vector<20x128xf32> to vector<16x128xf32>
    %56 = vector.broadcast %54 : vector<1x128xf32> to vector<16x128xf32>
    %57 = arith.mulf %55, %56 : vector<16x128xf32>
    %58 = arith.addf %53, %57 : vector<16x128xf32>
    %c8 = arith.constant 8 : index
    %c0_30 = arith.constant 0 : index
    %59 = vector.load %arg2[%c8, %c0_30] : memref<9x128xf32, #tpu.memory_space<vmem>>, vector<1x128xf32>
    %60 = vector.extract_strided_slice %48 {offsets = [3, 0], sizes = [16, 128], strides = [1, 1]} : vector<20x128xf32> to vector<16x128xf32>
    %61 = vector.broadcast %59 : vector<1x128xf32> to vector<16x128xf32>
    %62 = arith.mulf %60, %61 : vector<16x128xf32>
    %63 = arith.addf %58, %62 : vector<16x128xf32>
    %64 = vector.broadcast %14 : vector<1x128xf32> to vector<16x128xf32>
    %65 = arith.addf %63, %64 : vector<16x128xf32>
    %cst_31 = arith.constant 0.000000e+00 : f32
    %66 = vector.broadcast %cst_31 : f32 to vector<16x128xf32>
    %67 = arith.maximumf %65, %66 : vector<16x128xf32>
    %c0_32 = arith.constant 0 : index
    %c0_33 = arith.constant 0 : index
    %c0_34 = arith.constant 0 : index
    %68 = vector.load %arg11[%c0_32, %c0_33, %c0_34] : memref<2x16x128xf32, #tpu.memory_space<vmem>>, vector<1x16x128xf32>
    %69 = vector.shape_cast %68 : vector<1x16x128xf32> to vector<16x128xf32>
    %70 = vector.shape_cast %67 : vector<16x128xf32> to vector<1x16x128xf32>
    tpu.vector_store %arg11[%c0_32, %c0_33, %c0_34], %70 {strides = array<i32>} : memref<2x16x128xf32, #tpu.memory_space<vmem>>, vector<1x16x128xf32>,
    %cst_35 = arith.constant dense<0.000000e+00> : vector<1x128xf32>
    %71 = tpu.matmul %11, %67, %cst_35 {dimension_numbers = #tpu.dot_dimension_numbers<[1], [0], [0], [1], [0, 0, 1, 1], [], []>} : vector<1x16xf32>, vector<16x128xf32>, vector<1x128xf32> -> vector<1x128xf32>
    %72 = arith.addf %13, %71 : vector<1x128xf32>
    %c1_36 = arith.constant 1 : index
    %c0_37 = arith.constant 0 : index
    %73 = vector.load %arg4[%c1_36, %c0_37] : memref<2x128xf32, #tpu.memory_space<vmem>>, vector<1x128xf32>
    %cst_38 = arith.constant 0.000000e+00 : f32
    %74 = vector.broadcast %cst_38 : f32 to vector<16x128xf32>
    %c0_39 = arith.constant 0 : index
    %c112_40 = arith.constant 112 : index
    %75 = vector.load %arg10[%c0_39, %c112_40] : memref<20x384xf32, #tpu.memory_space<vmem>>, vector<20x128xf32>
    %c0_41 = arith.constant 0 : index
    %c0_42 = arith.constant 0 : index
    %76 = vector.load %arg3[%c0_41, %c0_42] : memref<25x128xf32, #tpu.memory_space<vmem>>, vector<1x128xf32>
    %77 = vector.extract_strided_slice %75 {offsets = [0, 0], sizes = [16, 128], strides = [1, 1]} : vector<20x128xf32> to vector<16x128xf32>
    %78 = vector.broadcast %76 : vector<1x128xf32> to vector<16x128xf32>
    %79 = arith.mulf %77, %78 : vector<16x128xf32>
    %80 = arith.addf %74, %79 : vector<16x128xf32>
    %c5_43 = arith.constant 5 : index
    %c0_44 = arith.constant 0 : index
    %81 = vector.load %arg3[%c5_43, %c0_44] : memref<25x128xf32, #tpu.memory_space<vmem>>, vector<1x128xf32>
    %82 = vector.extract_strided_slice %75 {offsets = [1, 0], sizes = [16, 128], strides = [1, 1]} : vector<20x128xf32> to vector<16x128xf32>
    %83 = vector.broadcast %81 : vector<1x128xf32> to vector<16x128xf32>
    %84 = arith.mulf %82, %83 : vector<16x128xf32>
    %85 = arith.addf %80, %84 : vector<16x128xf32>
    %c10 = arith.constant 10 : index
    %c0_45 = arith.constant 0 : index
    %86 = vector.load %arg3[%c10, %c0_45] : memref<25x128xf32, #tpu.memory_space<vmem>>, vector<1x128xf32>
    %87 = vector.extract_strided_slice %75 {offsets = [2, 0], sizes = [16, 128], strides = [1, 1]} : vector<20x128xf32> to vector<16x128xf32>
    %88 = vector.broadcast %86 : vector<1x128xf32> to vector<16x128xf32>
    %89 = arith.mulf %87, %88 : vector<16x128xf32>
    %90 = arith.addf %85, %89 : vector<16x128xf32>
    %c15 = arith.constant 15 : index
    %c0_46 = arith.constant 0 : index
    %91 = vector.load %arg3[%c15, %c0_46] : memref<25x128xf32, #tpu.memory_space<vmem>>, vector<1x128xf32>
    %92 = vector.extract_strided_slice %75 {offsets = [3, 0], sizes = [16, 128], strides = [1, 1]} : vector<20x128xf32> to vector<16x128xf32>
    %93 = vector.broadcast %91 : vector<1x128xf32> to vector<16x128xf32>
    %94 = arith.mulf %92, %93 : vector<16x128xf32>
    %95 = arith.addf %90, %94 : vector<16x128xf32>
    %c20 = arith.constant 20 : index
    %c0_47 = arith.constant 0 : index
    %96 = vector.load %arg3[%c20, %c0_47] : memref<25x128xf32, #tpu.memory_space<vmem>>, vector<1x128xf32>
    %97 = vector.extract_strided_slice %75 {offsets = [4, 0], sizes = [16, 128], strides = [1, 1]} : vector<20x128xf32> to vector<16x128xf32>
    %98 = vector.broadcast %96 : vector<1x128xf32> to vector<16x128xf32>
    %99 = arith.mulf %97, %98 : vector<16x128xf32>
    %100 = arith.addf %95, %99 : vector<16x128xf32>
    %c0_48 = arith.constant 0 : index
    %c120_49 = arith.constant 120 : index
    %101 = vector.load %arg10[%c0_48, %c120_49] : memref<20x384xf32, #tpu.memory_space<vmem>>, vector<20x128xf32>
    %c1_50 = arith.constant 1 : index
    %c0_51 = arith.constant 0 : index
    %102 = vector.load %arg3[%c1_50, %c0_51] : memref<25x128xf32, #tpu.memory_space<vmem>>, vector<1x128xf32>
    %103 = vector.extract_strided_slice %101 {offsets = [0, 0], sizes = [16, 128], strides = [1, 1]} : vector<20x128xf32> to vector<16x128xf32>
    %104 = vector.broadcast %102 : vector<1x128xf32> to vector<16x128xf32>
    %105 = arith.mulf %103, %104 : vector<16x128xf32>
    %106 = arith.addf %100, %105 : vector<16x128xf32>
    %c6_52 = arith.constant 6 : index
    %c0_53 = arith.constant 0 : index
    %107 = vector.load %arg3[%c6_52, %c0_53] : memref<25x128xf32, #tpu.memory_space<vmem>>, vector<1x128xf32>
    %108 = vector.extract_strided_slice %101 {offsets = [1, 0], sizes = [16, 128], strides = [1, 1]} : vector<20x128xf32> to vector<16x128xf32>
    %109 = vector.broadcast %107 : vector<1x128xf32> to vector<16x128xf32>
    %110 = arith.mulf %108, %109 : vector<16x128xf32>
    %111 = arith.addf %106, %110 : vector<16x128xf32>
    %c11 = arith.constant 11 : index
    %c0_54 = arith.constant 0 : index
    %112 = vector.load %arg3[%c11, %c0_54] : memref<25x128xf32, #tpu.memory_space<vmem>>, vector<1x128xf32>
    %113 = vector.extract_strided_slice %101 {offsets = [2, 0], sizes = [16, 128], strides = [1, 1]} : vector<20x128xf32> to vector<16x128xf32>
    %114 = vector.broadcast %112 : vector<1x128xf32> to vector<16x128xf32>
    %115 = arith.mulf %113, %114 : vector<16x128xf32>
    %116 = arith.addf %111, %115 : vector<16x128xf32>
    %c16 = arith.constant 16 : index
    %c0_55 = arith.constant 0 : index
    %117 = vector.load %arg3[%c16, %c0_55] : memref<25x128xf32, #tpu.memory_space<vmem>>, vector<1x128xf32>
    %118 = vector.extract_strided_slice %101 {offsets = [3, 0], sizes = [16, 128], strides = [1, 1]} : vector<20x128xf32> to vector<16x128xf32>
    %119 = vector.broadcast %117 : vector<1x128xf32> to vector<16x128xf32>
    %120 = arith.mulf %118, %119 : vector<16x128xf32>
    %121 = arith.addf %116, %120 : vector<16x128xf32>
    %c21 = arith.constant 21 : index
    %c0_56 = arith.constant 0 : index
    %122 = vector.load %arg3[%c21, %c0_56] : memref<25x128xf32, #tpu.memory_space<vmem>>, vector<1x128xf32>
    %123 = vector.extract_strided_slice %101 {offsets = [4, 0], sizes = [16, 128], strides = [1, 1]} : vector<20x128xf32> to vector<16x128xf32>
    %124 = vector.broadcast %122 : vector<1x128xf32> to vector<16x128xf32>
    %125 = arith.mulf %123, %124 : vector<16x128xf32>
    %126 = arith.addf %121, %125 : vector<16x128xf32>
    %c0_57 = arith.constant 0 : index
    %c128_58 = arith.constant 128 : index
    %127 = vector.load %arg10[%c0_57, %c128_58] : memref<20x384xf32, #tpu.memory_space<vmem>>, vector<20x128xf32>
    %c2_59 = arith.constant 2 : index
    %c0_60 = arith.constant 0 : index
    %128 = vector.load %arg3[%c2_59, %c0_60] : memref<25x128xf32, #tpu.memory_space<vmem>>, vector<1x128xf32>
    %129 = vector.extract_strided_slice %127 {offsets = [0, 0], sizes = [16, 128], strides = [1, 1]} : vector<20x128xf32> to vector<16x128xf32>
    %130 = vector.broadcast %128 : vector<1x128xf32> to vector<16x128xf32>
    %131 = arith.mulf %129, %130 : vector<16x128xf32>
    %132 = arith.addf %126, %131 : vector<16x128xf32>
    %c7_61 = arith.constant 7 : index
    %c0_62 = arith.constant 0 : index
    %133 = vector.load %arg3[%c7_61, %c0_62] : memref<25x128xf32, #tpu.memory_space<vmem>>, vector<1x128xf32>
    %134 = vector.extract_strided_slice %127 {offsets = [1, 0], sizes = [16, 128], strides = [1, 1]} : vector<20x128xf32> to vector<16x128xf32>
    %135 = vector.broadcast %133 : vector<1x128xf32> to vector<16x128xf32>
    %136 = arith.mulf %134, %135 : vector<16x128xf32>
    %137 = arith.addf %132, %136 : vector<16x128xf32>
    %c12 = arith.constant 12 : index
    %c0_63 = arith.constant 0 : index
    %138 = vector.load %arg3[%c12, %c0_63] : memref<25x128xf32, #tpu.memory_space<vmem>>, vector<1x128xf32>
    %139 = vector.extract_strided_slice %127 {offsets = [2, 0], sizes = [16, 128], strides = [1, 1]} : vector<20x128xf32> to vector<16x128xf32>
    %140 = vector.broadcast %138 : vector<1x128xf32> to vector<16x128xf32>
    %141 = arith.mulf %139, %140 : vector<16x128xf32>
    %142 = arith.addf %137, %141 : vector<16x128xf32>
    %c17 = arith.constant 17 : index
    %c0_64 = arith.constant 0 : index
    %143 = vector.load %arg3[%c17, %c0_64] : memref<25x128xf32, #tpu.memory_space<vmem>>, vector<1x128xf32>
    %144 = vector.extract_strided_slice %127 {offsets = [3, 0], sizes = [16, 128], strides = [1, 1]} : vector<20x128xf32> to vector<16x128xf32>
    %145 = vector.broadcast %143 : vector<1x128xf32> to vector<16x128xf32>
    %146 = arith.mulf %144, %145 : vector<16x128xf32>
    %147 = arith.addf %142, %146 : vector<16x128xf32>
    %c22 = arith.constant 22 : index
    %c0_65 = arith.constant 0 : index
    %148 = vector.load %arg3[%c22, %c0_65] : memref<25x128xf32, #tpu.memory_space<vmem>>, vector<1x128xf32>
    %149 = vector.extract_strided_slice %127 {offsets = [4, 0], sizes = [16, 128], strides = [1, 1]} : vector<20x128xf32> to vector<16x128xf32>
    %150 = vector.broadcast %148 : vector<1x128xf32> to vector<16x128xf32>
    %151 = arith.mulf %149, %150 : vector<16x128xf32>
    %152 = arith.addf %147, %151 : vector<16x128xf32>
    %c0_66 = arith.constant 0 : index
    %c136_67 = arith.constant 136 : index
    %153 = vector.load %arg10[%c0_66, %c136_67] : memref<20x384xf32, #tpu.memory_space<vmem>>, vector<20x128xf32>
    %c3_68 = arith.constant 3 : index
    %c0_69 = arith.constant 0 : index
    %154 = vector.load %arg3[%c3_68, %c0_69] : memref<25x128xf32, #tpu.memory_space<vmem>>, vector<1x128xf32>
    %155 = vector.extract_strided_slice %153 {offsets = [0, 0], sizes = [16, 128], strides = [1, 1]} : vector<20x128xf32> to vector<16x128xf32>
    %156 = vector.broadcast %154 : vector<1x128xf32> to vector<16x128xf32>
    %157 = arith.mulf %155, %156 : vector<16x128xf32>
    %158 = arith.addf %152, %157 : vector<16x128xf32>
    %c8_70 = arith.constant 8 : index
    %c0_71 = arith.constant 0 : index
    %159 = vector.load %arg3[%c8_70, %c0_71] : memref<25x128xf32, #tpu.memory_space<vmem>>, vector<1x128xf32>
    %160 = vector.extract_strided_slice %153 {offsets = [1, 0], sizes = [16, 128], strides = [1, 1]} : vector<20x128xf32> to vector<16x128xf32>
    %161 = vector.broadcast %159 : vector<1x128xf32> to vector<16x128xf32>
    %162 = arith.mulf %160, %161 : vector<16x128xf32>
    %163 = arith.addf %158, %162 : vector<16x128xf32>
    %c13 = arith.constant 13 : index
    %c0_72 = arith.constant 0 : index
    %164 = vector.load %arg3[%c13, %c0_72] : memref<25x128xf32, #tpu.memory_space<vmem>>, vector<1x128xf32>
    %165 = vector.extract_strided_slice %153 {offsets = [2, 0], sizes = [16, 128], strides = [1, 1]} : vector<20x128xf32> to vector<16x128xf32>
    %166 = vector.broadcast %164 : vector<1x128xf32> to vector<16x128xf32>
    %167 = arith.mulf %165, %166 : vector<16x128xf32>
    %168 = arith.addf %163, %167 : vector<16x128xf32>
    %c18_73 = arith.constant 18 : index
    %c0_74 = arith.constant 0 : index
    %169 = vector.load %arg3[%c18_73, %c0_74] : memref<25x128xf32, #tpu.memory_space<vmem>>, vector<1x128xf32>
    %170 = vector.extract_strided_slice %153 {offsets = [3, 0], sizes = [16, 128], strides = [1, 1]} : vector<20x128xf32> to vector<16x128xf32>
    %171 = vector.broadcast %169 : vector<1x128xf32> to vector<16x128xf32>
    %172 = arith.mulf %170, %171 : vector<16x128xf32>
    %173 = arith.addf %168, %172 : vector<16x128xf32>
    %c23 = arith.constant 23 : index
    %c0_75 = arith.constant 0 : index
    %174 = vector.load %arg3[%c23, %c0_75] : memref<25x128xf32, #tpu.memory_space<vmem>>, vector<1x128xf32>
    %175 = vector.extract_strided_slice %153 {offsets = [4, 0], sizes = [16, 128], strides = [1, 1]} : vector<20x128xf32> to vector<16x128xf32>
    %176 = vector.broadcast %174 : vector<1x128xf32> to vector<16x128xf32>
    %177 = arith.mulf %175, %176 : vector<16x128xf32>
    %178 = arith.addf %173, %177 : vector<16x128xf32>
    %c0_76 = arith.constant 0 : index
    %c144 = arith.constant 144 : index
    %179 = vector.load %arg10[%c0_76, %c144] : memref<20x384xf32, #tpu.memory_space<vmem>>, vector<20x128xf32>
    %c4_77 = arith.constant 4 : index
    %c0_78 = arith.constant 0 : index
    %180 = vector.load %arg3[%c4_77, %c0_78] : memref<25x128xf32, #tpu.memory_space<vmem>>, vector<1x128xf32>
    %181 = vector.extract_strided_slice %179 {offsets = [0, 0], sizes = [16, 128], strides = [1, 1]} : vector<20x128xf32> to vector<16x128xf32>
    %182 = vector.broadcast %180 : vector<1x128xf32> to vector<16x128xf32>
    %183 = arith.mulf %181, %182 : vector<16x128xf32>
    %184 = arith.addf %178, %183 : vector<16x128xf32>
    %c9 = arith.constant 9 : index
    %c0_79 = arith.constant 0 : index
    %185 = vector.load %arg3[%c9, %c0_79] : memref<25x128xf32, #tpu.memory_space<vmem>>, vector<1x128xf32>
    %186 = vector.extract_strided_slice %179 {offsets = [1, 0], sizes = [16, 128], strides = [1, 1]} : vector<20x128xf32> to vector<16x128xf32>
    %187 = vector.broadcast %185 : vector<1x128xf32> to vector<16x128xf32>
    %188 = arith.mulf %186, %187 : vector<16x128xf32>
    %189 = arith.addf %184, %188 : vector<16x128xf32>
    %c14 = arith.constant 14 : index
    %c0_80 = arith.constant 0 : index
    %190 = vector.load %arg3[%c14, %c0_80] : memref<25x128xf32, #tpu.memory_space<vmem>>, vector<1x128xf32>
    %191 = vector.extract_strided_slice %179 {offsets = [2, 0], sizes = [16, 128], strides = [1, 1]} : vector<20x128xf32> to vector<16x128xf32>
    %192 = vector.broadcast %190 : vector<1x128xf32> to vector<16x128xf32>
    %193 = arith.mulf %191, %192 : vector<16x128xf32>
    %194 = arith.addf %189, %193 : vector<16x128xf32>
    %c19 = arith.constant 19 : index
    %c0_81 = arith.constant 0 : index
    %195 = vector.load %arg3[%c19, %c0_81] : memref<25x128xf32, #tpu.memory_space<vmem>>, vector<1x128xf32>
    %196 = vector.extract_strided_slice %179 {offsets = [3, 0], sizes = [16, 128], strides = [1, 1]} : vector<20x128xf32> to vector<16x128xf32>
    %197 = vector.broadcast %195 : vector<1x128xf32> to vector<16x128xf32>
    %198 = arith.mulf %196, %197 : vector<16x128xf32>
    %199 = arith.addf %194, %198 : vector<16x128xf32>
    %c24 = arith.constant 24 : index
    %c0_82 = arith.constant 0 : index
    %200 = vector.load %arg3[%c24, %c0_82] : memref<25x128xf32, #tpu.memory_space<vmem>>, vector<1x128xf32>
    %201 = vector.extract_strided_slice %179 {offsets = [4, 0], sizes = [16, 128], strides = [1, 1]} : vector<20x128xf32> to vector<16x128xf32>
    %202 = vector.broadcast %200 : vector<1x128xf32> to vector<16x128xf32>
    %203 = arith.mulf %201, %202 : vector<16x128xf32>
    %204 = arith.addf %199, %203 : vector<16x128xf32>
    %205 = vector.broadcast %73 : vector<1x128xf32> to vector<16x128xf32>
    %206 = arith.addf %204, %205 : vector<16x128xf32>
    %cst_83 = arith.constant 0.000000e+00 : f32
    %207 = vector.broadcast %cst_83 : f32 to vector<16x128xf32>
    %208 = arith.maximumf %206, %207 : vector<16x128xf32>
    %c1_84 = arith.constant 1 : index
    %c0_85 = arith.constant 0 : index
    %c0_86 = arith.constant 0 : index
    %209 = vector.load %arg11[%c1_84, %c0_85, %c0_86] : memref<2x16x128xf32, #tpu.memory_space<vmem>>, vector<1x16x128xf32>
    %210 = vector.shape_cast %209 : vector<1x16x128xf32> to vector<16x128xf32>
    %211 = vector.shape_cast %208 : vector<16x128xf32> to vector<1x16x128xf32>
    tpu.vector_store %arg11[%c1_84, %c0_85, %c0_86], %211 {strides = array<i32>} : memref<2x16x128xf32, #tpu.memory_space<vmem>>, vector<1x16x128xf32>,
    %cst_87 = arith.constant dense<0.000000e+00> : vector<1x128xf32>
    %212 = tpu.matmul %11, %208, %cst_87 {dimension_numbers = #tpu.dot_dimension_numbers<[1], [0], [0], [1], [0, 0, 1, 1], [], []>} : vector<1x16xf32>, vector<16x128xf32>, vector<1x128xf32> -> vector<1x128xf32>
    %213 = arith.addf %72, %212 : vector<1x128xf32>
    %214 = vector.extract_strided_slice %213 {offsets = [0, 0], sizes = [1, 8], strides = [1, 1]} : vector<1x128xf32> to vector<1x8xf32>
    %215 = vector.extract_strided_slice %213 {offsets = [0, 8], sizes = [1, 8], strides = [1, 1]} : vector<1x128xf32> to vector<1x8xf32>
    %216 = vector.extract_strided_slice %213 {offsets = [0, 16], sizes = [1, 8], strides = [1, 1]} : vector<1x128xf32> to vector<1x8xf32>
    %217 = vector.extract_strided_slice %213 {offsets = [0, 24], sizes = [1, 8], strides = [1, 1]} : vector<1x128xf32> to vector<1x8xf32>
    %218 = vector.extract_strided_slice %213 {offsets = [0, 32], sizes = [1, 8], strides = [1, 1]} : vector<1x128xf32> to vector<1x8xf32>
    %219 = vector.extract_strided_slice %213 {offsets = [0, 40], sizes = [1, 8], strides = [1, 1]} : vector<1x128xf32> to vector<1x8xf32>
    %220 = vector.extract_strided_slice %213 {offsets = [0, 48], sizes = [1, 8], strides = [1, 1]} : vector<1x128xf32> to vector<1x8xf32>
    %221 = vector.extract_strided_slice %213 {offsets = [0, 56], sizes = [1, 8], strides = [1, 1]} : vector<1x128xf32> to vector<1x8xf32>
    %222 = vector.extract_strided_slice %213 {offsets = [0, 64], sizes = [1, 8], strides = [1, 1]} : vector<1x128xf32> to vector<1x8xf32>
    %223 = vector.extract_strided_slice %213 {offsets = [0, 72], sizes = [1, 8], strides = [1, 1]} : vector<1x128xf32> to vector<1x8xf32>
    %224 = vector.extract_strided_slice %213 {offsets = [0, 80], sizes = [1, 8], strides = [1, 1]} : vector<1x128xf32> to vector<1x8xf32>
    %225 = vector.extract_strided_slice %213 {offsets = [0, 88], sizes = [1, 8], strides = [1, 1]} : vector<1x128xf32> to vector<1x8xf32>
    %226 = vector.extract_strided_slice %213 {offsets = [0, 96], sizes = [1, 8], strides = [1, 1]} : vector<1x128xf32> to vector<1x8xf32>
    %227 = vector.extract_strided_slice %213 {offsets = [0, 104], sizes = [1, 8], strides = [1, 1]} : vector<1x128xf32> to vector<1x8xf32>
    %228 = vector.extract_strided_slice %213 {offsets = [0, 112], sizes = [1, 8], strides = [1, 1]} : vector<1x128xf32> to vector<1x8xf32>
    %229 = vector.extract_strided_slice %213 {offsets = [0, 120], sizes = [1, 8], strides = [1, 1]} : vector<1x128xf32> to vector<1x8xf32>
    %230 = arith.addf %214, %215 : vector<1x8xf32>
    %231 = arith.addf %216, %217 : vector<1x8xf32>
    %232 = arith.addf %218, %219 : vector<1x8xf32>
    %233 = arith.addf %220, %221 : vector<1x8xf32>
    %234 = arith.addf %222, %223 : vector<1x8xf32>
    %235 = arith.addf %224, %225 : vector<1x8xf32>
    %236 = arith.addf %226, %227 : vector<1x8xf32>
    %237 = arith.addf %228, %229 : vector<1x8xf32>
    %238 = arith.addf %230, %231 : vector<1x8xf32>
    %239 = arith.addf %232, %233 : vector<1x8xf32>
    %240 = arith.addf %234, %235 : vector<1x8xf32>
    %241 = arith.addf %236, %237 : vector<1x8xf32>
    %242 = arith.addf %238, %239 : vector<1x8xf32>
    %243 = arith.addf %240, %241 : vector<1x8xf32>
    %244 = arith.addf %242, %243 : vector<1x8xf32>
    %245 = arith.addf %12, %244 : vector<1x8xf32>
    %cst_88 = arith.constant 3.906250e-03 : f32
    %246 = vector.broadcast %cst_88 : f32 to vector<1x8xf32>
    %247 = arith.mulf %245, %246 : vector<1x8xf32>
    %c0_89 = arith.constant 0 : index
    %c0_90 = arith.constant 0 : index
    %248 = vector.load %arg5[%c0_89, %c0_90] : memref<8x32xf32, #tpu.memory_space<vmem>>, vector<8x32xf32>
    %cst_91 = arith.constant dense<0.000000e+00> : vector<1x32xf32>
    %249 = tpu.matmul %247, %248, %cst_91 {dimension_numbers = #tpu.dot_dimension_numbers<[1], [0], [0], [1], [0, 0, 1, 1], [], []>} : vector<1x8xf32>, vector<8x32xf32>, vector<1x32xf32> -> vector<1x32xf32>
    %c0_92 = arith.constant 0 : index
    %c0_93 = arith.constant 0 : index
    %250 = vector.load %arg6[%c0_92, %c0_93] : memref<1x32xf32, #tpu.memory_space<vmem>>, vector<1x32xf32>
    %251 = arith.addf %249, %250 : vector<1x32xf32>
    %c0_94 = arith.constant 0 : index
    %c0_95 = arith.constant 0 : index
    %c0_96 = arith.constant 0 : index
    %252 = vector.load %arg7[%c0_94, %c0_95, %c0_96] : memref<2x32x8xf32, #tpu.memory_space<vmem>>, vector<1x32x8xf32>
    %253 = vector.shape_cast %252 : vector<1x32x8xf32> to vector<32x8xf32>
    %cst_97 = arith.constant dense<0.000000e+00> : vector<1x8xf32>
    %254 = tpu.matmul %251, %253, %cst_97 {dimension_numbers = #tpu.dot_dimension_numbers<[1], [0], [0], [1], [0, 0, 1, 1], [], []>} : vector<1x32xf32>, vector<32x8xf32>, vector<1x8xf32> -> vector<1x8xf32>
    %c0_98 = arith.constant 0 : index
    %c0_99 = arith.constant 0 : index
    %255 = vector.load %arg8[%c0_98, %c0_99] : memref<2x8xf32, #tpu.memory_space<vmem>>, vector<1x8xf32>
    %256 = arith.addf %254, %255 : vector<1x8xf32>
    %c1_100 = arith.constant 1 : index
    %c0_101 = arith.constant 0 : index
    %c0_102 = arith.constant 0 : index
    %257 = vector.load %arg7[%c1_100, %c0_101, %c0_102] : memref<2x32x8xf32, #tpu.memory_space<vmem>>, vector<1x32x8xf32>
    %258 = vector.shape_cast %257 : vector<1x32x8xf32> to vector<32x8xf32>
    %cst_103 = arith.constant dense<0.000000e+00> : vector<1x8xf32>
    %259 = tpu.matmul %251, %258, %cst_103 {dimension_numbers = #tpu.dot_dimension_numbers<[1], [0], [0], [1], [0, 0, 1, 1], [], []>} : vector<1x32xf32>, vector<32x8xf32>, vector<1x8xf32> -> vector<1x8xf32>
    %c1_104 = arith.constant 1 : index
    %c0_105 = arith.constant 0 : index
    %260 = vector.load %arg8[%c1_104, %c0_105] : memref<2x8xf32, #tpu.memory_space<vmem>>, vector<1x8xf32>
    %261 = arith.addf %259, %260 : vector<1x8xf32>
    %262 = arith.maximumf %256, %261 : vector<1x8xf32>
    %263 = arith.subf %256, %262 : vector<1x8xf32>
    %264 = math.exp %263 : vector<1x8xf32>
    %265 = arith.subf %261, %262 : vector<1x8xf32>
    %266 = math.exp %265 : vector<1x8xf32>
    %267 = arith.addf %264, %266 : vector<1x8xf32>
    %268 = tpu.reciprocal %267 {approx = true} : vector<1x8xf32> -> vector<1x8xf32>
    %269 = arith.mulf %267, %268 : vector<1x8xf32>
    %cst_106 = arith.constant 2.000000e+00 : f32
    %270 = vector.broadcast %cst_106 : f32 to vector<1x8xf32>
    %271 = arith.subf %270, %269 : vector<1x8xf32>
    %272 = arith.mulf %268, %271 : vector<1x8xf32>
    %273 = arith.mulf %264, %272 : vector<1x8xf32>
    %c0_107 = arith.constant 0 : index
    %c0_108 = arith.constant 0 : index
    %274 = vector.load %arg12[%c0_107, %c0_108] : memref<2x128xf32, #tpu.memory_space<vmem>>, vector<1x8xf32>
    tpu.vector_store %arg12[%c0_107, %c0_108], %273 {strides = array<i32>} : memref<2x128xf32, #tpu.memory_space<vmem>>, vector<1x8xf32>,
    %c0_109 = arith.constant 0 : index
    %c0_110 = arith.constant 0 : index
    %275 = vector.load %arg12[%c0_109, %c0_110] : memref<2x128xf32, #tpu.memory_space<vmem>>, vector<1x8xf32>
    %c0_111 = arith.constant 0 : index
    %c8_112 = arith.constant 8 : index
    %276 = vector.load %arg12[%c0_111, %c8_112] : memref<2x128xf32, #tpu.memory_space<vmem>>, vector<1x8xf32>
    tpu.vector_store %arg12[%c0_111, %c8_112], %275 {strides = array<i32>} : memref<2x128xf32, #tpu.memory_space<vmem>>, vector<1x8xf32>,
    %c0_113 = arith.constant 0 : index
    %c0_114 = arith.constant 0 : index
    %277 = vector.load %arg12[%c0_113, %c0_114] : memref<2x128xf32, #tpu.memory_space<vmem>>, vector<1x16xf32>
    %c0_115 = arith.constant 0 : index
    %c16_116 = arith.constant 16 : index
    %278 = vector.load %arg12[%c0_115, %c16_116] : memref<2x128xf32, #tpu.memory_space<vmem>>, vector<1x16xf32>
    tpu.vector_store %arg12[%c0_115, %c16_116], %277 {strides = array<i32>} : memref<2x128xf32, #tpu.memory_space<vmem>>, vector<1x16xf32>,
    %c0_117 = arith.constant 0 : index
    %c0_118 = arith.constant 0 : index
    %279 = vector.load %arg12[%c0_117, %c0_118] : memref<2x128xf32, #tpu.memory_space<vmem>>, vector<1x32xf32>
    %c0_119 = arith.constant 0 : index
    %c32 = arith.constant 32 : index
    %280 = vector.load %arg12[%c0_119, %c32] : memref<2x128xf32, #tpu.memory_space<vmem>>, vector<1x32xf32>
    tpu.vector_store %arg12[%c0_119, %c32], %279 {strides = array<i32>} : memref<2x128xf32, #tpu.memory_space<vmem>>, vector<1x32xf32>,
    %c0_120 = arith.constant 0 : index
    %c0_121 = arith.constant 0 : index
    %281 = vector.load %arg12[%c0_120, %c0_121] : memref<2x128xf32, #tpu.memory_space<vmem>>, vector<1x64xf32>
    %c0_122 = arith.constant 0 : index
    %c64 = arith.constant 64 : index
    %282 = vector.load %arg12[%c0_122, %c64] : memref<2x128xf32, #tpu.memory_space<vmem>>, vector<1x64xf32>
    tpu.vector_store %arg12[%c0_122, %c64], %281 {strides = array<i32>} : memref<2x128xf32, #tpu.memory_space<vmem>>, vector<1x64xf32>,
    %283 = arith.mulf %266, %272 : vector<1x8xf32>
    %c1_123 = arith.constant 1 : index
    %c0_124 = arith.constant 0 : index
    %284 = vector.load %arg12[%c1_123, %c0_124] : memref<2x128xf32, #tpu.memory_space<vmem>>, vector<1x8xf32>
    tpu.vector_store %arg12[%c1_123, %c0_124], %283 {strides = array<i32>} : memref<2x128xf32, #tpu.memory_space<vmem>>, vector<1x8xf32>,
    %c1_125 = arith.constant 1 : index
    %c0_126 = arith.constant 0 : index
    %285 = vector.load %arg12[%c1_125, %c0_126] : memref<2x128xf32, #tpu.memory_space<vmem>>, vector<1x8xf32>
    %c1_127 = arith.constant 1 : index
    %c8_128 = arith.constant 8 : index
    %286 = vector.load %arg12[%c1_127, %c8_128] : memref<2x128xf32, #tpu.memory_space<vmem>>, vector<1x8xf32>
    tpu.vector_store %arg12[%c1_127, %c8_128], %285 {strides = array<i32>} : memref<2x128xf32, #tpu.memory_space<vmem>>, vector<1x8xf32>,
    %c1_129 = arith.constant 1 : index
    %c0_130 = arith.constant 0 : index
    %287 = vector.load %arg12[%c1_129, %c0_130] : memref<2x128xf32, #tpu.memory_space<vmem>>, vector<1x16xf32>
    %c1_131 = arith.constant 1 : index
    %c16_132 = arith.constant 16 : index
    %288 = vector.load %arg12[%c1_131, %c16_132] : memref<2x128xf32, #tpu.memory_space<vmem>>, vector<1x16xf32>
    tpu.vector_store %arg12[%c1_131, %c16_132], %287 {strides = array<i32>} : memref<2x128xf32, #tpu.memory_space<vmem>>, vector<1x16xf32>,
    %c1_133 = arith.constant 1 : index
    %c0_134 = arith.constant 0 : index
    %289 = vector.load %arg12[%c1_133, %c0_134] : memref<2x128xf32, #tpu.memory_space<vmem>>, vector<1x32xf32>
    %c1_135 = arith.constant 1 : index
    %c32_136 = arith.constant 32 : index
    %290 = vector.load %arg12[%c1_135, %c32_136] : memref<2x128xf32, #tpu.memory_space<vmem>>, vector<1x32xf32>
    tpu.vector_store %arg12[%c1_135, %c32_136], %289 {strides = array<i32>} : memref<2x128xf32, #tpu.memory_space<vmem>>, vector<1x32xf32>,
    %c1_137 = arith.constant 1 : index
    %c0_138 = arith.constant 0 : index
    %291 = vector.load %arg12[%c1_137, %c0_138] : memref<2x128xf32, #tpu.memory_space<vmem>>, vector<1x64xf32>
    %c1_139 = arith.constant 1 : index
    %c64_140 = arith.constant 64 : index
    %292 = vector.load %arg12[%c1_139, %c64_140] : memref<2x128xf32, #tpu.memory_space<vmem>>, vector<1x64xf32>
    tpu.vector_store %arg12[%c1_139, %c64_140], %291 {strides = array<i32>} : memref<2x128xf32, #tpu.memory_space<vmem>>, vector<1x64xf32>,
    %cst_141 = arith.constant 0.000000e+00 : f32
    %293 = vector.broadcast %cst_141 : f32 to vector<16x128xf32>
    %c0_142 = arith.constant 0 : index
    %c0_143 = arith.constant 0 : index
    %c0_144 = arith.constant 0 : index
    %294 = vector.load %arg11[%c0_142, %c0_143, %c0_144] : memref<2x16x128xf32, #tpu.memory_space<vmem>>, vector<1x16x128xf32>
    %295 = vector.shape_cast %294 : vector<1x16x128xf32> to vector<16x128xf32>
    %c0_145 = arith.constant 0 : index
    %c0_146 = arith.constant 0 : index
    %296 = vector.load %arg12[%c0_145, %c0_146] : memref<2x128xf32, #tpu.memory_space<vmem>>, vector<1x128xf32>
    %297 = vector.broadcast %296 : vector<1x128xf32> to vector<16x128xf32>
    %298 = arith.mulf %295, %297 : vector<16x128xf32>
    %299 = arith.addf %293, %298 : vector<16x128xf32>
    %c1_147 = arith.constant 1 : index
    %c0_148 = arith.constant 0 : index
    %c0_149 = arith.constant 0 : index
    %300 = vector.load %arg11[%c1_147, %c0_148, %c0_149] : memref<2x16x128xf32, #tpu.memory_space<vmem>>, vector<1x16x128xf32>
    %301 = vector.shape_cast %300 : vector<1x16x128xf32> to vector<16x128xf32>
    %c1_150 = arith.constant 1 : index
    %c0_151 = arith.constant 0 : index
    %302 = vector.load %arg12[%c1_150, %c0_151] : memref<2x128xf32, #tpu.memory_space<vmem>>, vector<1x128xf32>
    %303 = vector.broadcast %302 : vector<1x128xf32> to vector<16x128xf32>
    %304 = arith.mulf %301, %303 : vector<16x128xf32>
    %305 = arith.addf %299, %304 : vector<16x128xf32>
    %c0_152 = arith.constant 0 : index
    %c0_153 = arith.constant 0 : index
    %c0_154 = arith.constant 0 : index
    %306 = vector.load %arg9[%c0_152, %c0_153, %c0_154] : memref<1x16x128xf32, #tpu.memory_space<vmem>>, vector<1x16x128xf32>
    %307 = vector.shape_cast %306 : vector<1x16x128xf32> to vector<16x128xf32>
    %308 = vector.shape_cast %305 : vector<16x128xf32> to vector<1x16x128xf32>
    tpu.vector_store %arg9[%c0_152, %c0_153, %c0_154], %308 {strides = array<i32>} : memref<1x16x128xf32, #tpu.memory_space<vmem>>, vector<1x16x128xf32>,
    return
  }
  func.func @transform_0(%arg0: i32) -> (i32, i32, i32) {
    %c0_i32 = arith.constant 0 : i32
    %c0_i32_0 = arith.constant 0 : i32
    %c0_i32_1 = arith.constant 0 : i32
    return %arg0, %c0_i32, %c0_i32_0 : i32, i32, i32
  }
  func.func @transform_1(%arg0: i32) -> (i32, i32) {
    %c0_i32 = arith.constant 0 : i32
    %c0_i32_0 = arith.constant 0 : i32
    %c0_i32_1 = arith.constant 0 : i32
    return %c0_i32, %c0_i32_0 : i32, i32
  }
  func.func @transform_2(%arg0: i32) -> (i32, i32) {
    %c0_i32 = arith.constant 0 : i32
    %c0_i32_0 = arith.constant 0 : i32
    %c0_i32_1 = arith.constant 0 : i32
    return %c0_i32, %c0_i32_0 : i32, i32
  }
  func.func @transform_3(%arg0: i32) -> (i32, i32) {
    %c0_i32 = arith.constant 0 : i32
    %c0_i32_0 = arith.constant 0 : i32
    %c0_i32_1 = arith.constant 0 : i32
    return %c0_i32, %c0_i32_0 : i32, i32
  }
  func.func @transform_4(%arg0: i32) -> (i32, i32) {
    %c0_i32 = arith.constant 0 : i32
    %c0_i32_0 = arith.constant 0 : i32
    %c0_i32_1 = arith.constant 0 : i32
    return %c0_i32, %c0_i32_0 : i32, i32
  }
  func.func @transform_5(%arg0: i32) -> (i32, i32) {
    %c0_i32 = arith.constant 0 : i32
    %c0_i32_0 = arith.constant 0 : i32
    %c0_i32_1 = arith.constant 0 : i32
    return %c0_i32, %c0_i32_0 : i32, i32
  }
  func.func @transform_6(%arg0: i32) -> (i32, i32, i32) {
    %c0_i32 = arith.constant 0 : i32
    %c0_i32_0 = arith.constant 0 : i32
    %c0_i32_1 = arith.constant 0 : i32
    %c0_i32_2 = arith.constant 0 : i32
    return %c0_i32, %c0_i32_0, %c0_i32_1 : i32, i32, i32
  }
  func.func @transform_7(%arg0: i32) -> (i32, i32) {
    %c0_i32 = arith.constant 0 : i32
    %c0_i32_0 = arith.constant 0 : i32
    %c0_i32_1 = arith.constant 0 : i32
    return %c0_i32, %c0_i32_0 : i32, i32
  }
  func.func @transform_8(%arg0: i32) -> (i32, i32, i32) {
    %c0_i32 = arith.constant 0 : i32
    %c0_i32_0 = arith.constant 0 : i32
    %c0_i32_1 = arith.constant 0 : i32
    return %arg0, %c0_i32, %c0_i32_0 : i32, i32, i32
  }
}

</mosaic_0001>

<llo_original>
// kernel: tpu_custom_call.1
$region0: #{tpu_custom_call.1}
  #allocation0 [shape = 'u32[]', space=smem, size = 0x4, offset = 0x4, fixed_abs, tag = 'smem constant byte address 0x4 - core index']
  #allocation1 [shape = 'u32[144,128]{1,0:T(1,128)}', space=vmem, size = 0x12000, scoped, tag = 'internal scratch']
  #allocation2 [shape = 'f32[20,384]{1,0:T(8,128)}', space=vmem, size = 0x9000, scoped, tag = 'scratch operand']
  #allocation3 [shape = 'f32[2,16,128]{2,1,0:T(8,128)}', space=vmem, size = 0x4000, scoped, tag = 'scratch operand']
  #allocation4 [shape = 'f32[2,128]{1,0:T(2,128)}', space=vmem, size = 0x400, scoped, tag = 'scratch operand']
  %s0 = inlined_call_operand.vmem [shape: f32[2,16,128], index: 0, kind: input, shape index: {}]
  %s1 = inlined_call_operand.vmem [shape: f32[9,128], index: 1, kind: input, shape index: {}]
  %s2 = inlined_call_operand.vmem [shape: f32[25,128], index: 2, kind: input, shape index: {}]
  %s3 = inlined_call_operand.vmem [shape: f32[2,128], index: 3, kind: input, shape index: {}]
  %s4 = inlined_call_operand.hbm [shape: f32[8,32], index: 4, kind: input, shape index: {}]
  %s5 = inlined_call_operand.vmem [shape: f32[1,32], index: 5, kind: input, shape index: {}]
  %s6 = inlined_call_operand.vmem [shape: f32[2,32,8], index: 6, kind: input, shape index: {}]
  %s7 = inlined_call_operand.vmem [shape: f32[2,8], index: 7, kind: input, shape index: {}]
  %s8 = inlined_call_operand.hbm [shape: f32[2,16,128], index: 8, kind: output, shape index: {}]
  %s9 = sld [smem:[#allocation0]]
  $region69: #{tpu_custom_call.1} parent=0
    _
  %s11 = ssub.s32 1, %s9
  %s12 = scalar_select 0, %s11, %s9
  $region1: #{tpu_custom_call.1} parent=0
    #allocation5 [shape = 'u8[4096]{0}', space=vmem, size = 0x1000, scoped, tag = 'input window, operand 4, single buffered']
    #allocation6 [shape = 's32[2]{0}', space=sflag, size = 0x8, scoped, tag = 'scoped memory for tpu_custom_call.1']
    #allocation7 [shape = 's32[2]{0}', space=sflag, size = 0x8, scoped, tag = 'scoped memory for tpu_custom_call.1']
    #allocation8 [shape = 'u8[16384]{0}', space=vmem, size = 0x4000, scoped, tag = 'output window, operand 0']
    %13 = vsyncpa [#allocation6], 0
    %14 = vsyncpa [#allocation7], 0
    %s15 = scalar_lea.sflag [#allocation7], 1
    %16 = vsyncpa %s15, 0
    loop: start=0, step=1, limit=4
    $region2: #{tpu_custom_call.1} parent=1 // loop_pre_header
      _
    $region3: #{tpu_custom_call.1} parent=1 // loop_header
      %s18 = sphi 0, %s22
      %p19 = scmp.ge.s32.totalorder %s18, 4
      %s28 = sphi 0, %s30
      %s31 = sphi 0, %s28
      %s32 = sphi 0, %s31
      %s48 = sphi 0, %s32
      %s52 = sphi 0, %s52
      %s54 = sphi 0, %s52
      %s55 = sphi 0, %s54
      %s69 = sphi 0, %s55
      %s73 = sphi 0, %s73
      %s75 = sphi 0, %s73
      %s76 = sphi 0, %s75
      %s90 = sphi 0, %s76
      %s94 = sphi 0, %s94
      %s96 = sphi 0, %s94
      %s97 = sphi 0, %s96
      %s111 = sphi 0, %s97
      %s115 = sphi 0, %s115
      %s117 = sphi 0, %s115
      %s118 = sphi 0, %s117
      %s132 = sphi 0, %s118
      %s136 = sphi 0, %s136
      %s138 = sphi 0, %s136
      %s139 = sphi 0, %s138
      %s153 = sphi 0, %s139
      %s157 = sphi 0, %s157
      %s159 = sphi 0, %s157
      %s160 = sphi 0, %s159
      %s174 = sphi 0, %s160
      %s178 = sphi 0, %s178
      %s180 = sphi 0, %s178
      %s181 = sphi 0, %s180
      %s195 = sphi 0, %s181
      %s201 = sphi 0, %s203
      %s204 = sphi 0, %s201
      %s205 = sphi 0, %s204
      %s221 = sphi 0, %s205
    $region4: #{tpu_custom_call.1} parent=1 // loop_header_branch
      %21 = sbr.rel (%p19) target = $region8
    $region5: #{tpu_custom_call.1} parent=1 // loop_body
      %s23 = ssub.s32 %s18, 1
      %s24 = ssub.s32 %s18, 2
      %s25 = sadd.s32 %s18, 1
      %s26 = ssub.s32 %s18, %s25
      %p27 = scmp.eq.s32.totalorder %s26, 0
      %s29 = sadd.s32 %s28, 1
      %s30 = scalar_select %p27, %s28, %s29
      %p33 = pneg %p27
      %p34 = scmp.eq.s32.totalorder %s18, 1
      %p35 = por %p33, %p34
      %p36 = scmp.ne.s32.totalorder %s28, %s31
      %p37 = scmp.eq.s32.totalorder %s18, 0
      %p38 = por %p36, %p37
      %p39 = scmp.ne.s32.totalorder %s28, %s31
      %p40 = scmp.eq.s32.totalorder %s23, 1
      %p41 = por %p39, %p40
      %p42 = scmp.ne.s32.totalorder %s31, %s32
      %p43 = scmp.eq.s32.totalorder %s23, 0
      %p44 = por %p42, %p43
      %p45 = scmp.ne.s32.totalorder %s31, %s32
      %p46 = scmp.eq.s32.totalorder %s24, 1
      %p47 = por %p45, %p46
      %p49 = scmp.ne.s32.totalorder %s32, %s48
      %p50 = scmp.eq.s32.totalorder %s24, 0
      %p51 = por %p49, %p50
      %s53 = sadd.s32 %s52, 1
      %p56 = scmp.eq.s32.totalorder %s18, 1
      %p57 = scmp.ne.s32.totalorder %s52, %s54
      %p58 = scmp.eq.s32.totalorder %s18, 0
      %p59 = por %p57, %p58
      %p60 = scmp.ne.s32.totalorder %s52, %s54
      %p61 = scmp.eq.s32.totalorder %s23, 1
      %p62 = por %p60, %p61
      %p63 = scmp.ne.s32.totalorder %s54, %s55
      %p64 = scmp.eq.s32.totalorder %s23, 0
      %p65 = por %p63, %p64
      %p66 = scmp.ne.s32.totalorder %s54, %s55
      %p67 = scmp.eq.s32.totalorder %s24, 1
      %p68 = por %p66, %p67
      %p70 = scmp.ne.s32.totalorder %s55, %s69
      %p71 = scmp.eq.s32.totalorder %s24, 0
      %p72 = por %p70, %p71
      %s74 = sadd.s32 %s73, 1
      %p77 = scmp.eq.s32.totalorder %s18, 1
      %p78 = scmp.ne.s32.totalorder %s73, %s75
      %p79 = scmp.eq.s32.totalorder %s18, 0
      %p80 = por %p78, %p79
      %p81 = scmp.ne.s32.totalorder %s73, %s75
      %p82 = scmp.eq.s32.totalorder %s23, 1
      %p83 = por %p81, %p82
      %p84 = scmp.ne.s32.totalorder %s75, %s76
      %p85 = scmp.eq.s32.totalorder %s23, 0
      %p86 = por %p84, %p85
      %p87 = scmp.ne.s32.totalorder %s75, %s76
      %p88 = scmp.eq.s32.totalorder %s24, 1
      %p89 = por %p87, %p88
      %p91 = scmp.ne.s32.totalorder %s76, %s90
      %p92 = scmp.eq.s32.totalorder %s24, 0
      %p93 = por %p91, %p92
      %s95 = sadd.s32 %s94, 1
      %p98 = scmp.eq.s32.totalorder %s18, 1
      %p99 = scmp.ne.s32.totalorder %s94, %s96
      %p100 = scmp.eq.s32.totalorder %s18, 0
      %p101 = por %p99, %p100
      %p102 = scmp.ne.s32.totalorder %s94, %s96
      %p103 = scmp.eq.s32.totalorder %s23, 1
      %p104 = por %p102, %p103
      %p105 = scmp.ne.s32.totalorder %s96, %s97
      %p106 = scmp.eq.s32.totalorder %s23, 0
      %p107 = por %p105, %p106
      %p108 = scmp.ne.s32.totalorder %s96, %s97
      %p109 = scmp.eq.s32.totalorder %s24, 1
      %p110 = por %p108, %p109
      %p112 = scmp.ne.s32.totalorder %s97, %s111
      %p113 = scmp.eq.s32.totalorder %s24, 0
      %p114 = por %p112, %p113
      %s116 = sadd.s32 %s115, 1
      %p119 = scmp.eq.s32.totalorder %s18, 1
      %p120 = scmp.ne.s32.totalorder %s115, %s117
      %p121 = scmp.eq.s32.totalorder %s18, 0
      %p122 = por %p120, %p121
      %p123 = scmp.ne.s32.totalorder %s115, %s117
      %p124 = scmp.eq.s32.totalorder %s23, 1
      %p125 = por %p123, %p124
      %p126 = scmp.ne.s32.totalorder %s117, %s118
      %p127 = scmp.eq.s32.totalorder %s23, 0
      %p128 = por %p126, %p127
      %p129 = scmp.ne.s32.totalorder %s117, %s118
      %p130 = scmp.eq.s32.totalorder %s24, 1
      %p131 = por %p129, %p130
      %p133 = scmp.ne.s32.totalorder %s118, %s132
      %p134 = scmp.eq.s32.totalorder %s24, 0
      %p135 = por %p133, %p134
      %s137 = sadd.s32 %s136, 1
      %p140 = scmp.eq.s32.totalorder %s18, 1
      %p141 = scmp.ne.s32.totalorder %s136, %s138
      %p142 = scmp.eq.s32.totalorder %s18, 0
      %p143 = por %p141, %p142
      %p144 = scmp.ne.s32.totalorder %s136, %s138
      %p145 = scmp.eq.s32.totalorder %s23, 1
      %p146 = por %p144, %p145
      %p147 = scmp.ne.s32.totalorder %s138, %s139
      %p148 = scmp.eq.s32.totalorder %s23, 0
      %p149 = por %p147, %p148
      %p150 = scmp.ne.s32.totalorder %s138, %s139
      %p151 = scmp.eq.s32.totalorder %s24, 1
      %p152 = por %p150, %p151
      %p154 = scmp.ne.s32.totalorder %s139, %s153
      %p155 = scmp.eq.s32.totalorder %s24, 0
      %p156 = por %p154, %p155
      %s158 = sadd.s32 %s157, 1
      %p161 = scmp.eq.s32.totalorder %s18, 1
      %p162 = scmp.ne.s32.totalorder %s157, %s159
      %p163 = scmp.eq.s32.totalorder %s18, 0
      %p164 = por %p162, %p163
      %p165 = scmp.ne.s32.totalorder %s157, %s159
      %p166 = scmp.eq.s32.totalorder %s23, 1
      %p167 = por %p165, %p166
      %p168 = scmp.ne.s32.totalorder %s159, %s160
      %p169 = scmp.eq.s32.totalorder %s23, 0
      %p170 = por %p168, %p169
      %p171 = scmp.ne.s32.totalorder %s159, %s160
      %p172 = scmp.eq.s32.totalorder %s24, 1
      %p173 = por %p171, %p172
      %p175 = scmp.ne.s32.totalorder %s160, %s174
      %p176 = scmp.eq.s32.totalorder %s24, 0
      %p177 = por %p175, %p176
      %s179 = sadd.s32 %s178, 1
      %p182 = scmp.eq.s32.totalorder %s18, 1
      %p183 = scmp.ne.s32.totalorder %s178, %s180
      %p184 = scmp.eq.s32.totalorder %s18, 0
      %p185 = por %p183, %p184
      %p186 = scmp.ne.s32.totalorder %s178, %s180
      %p187 = scmp.eq.s32.totalorder %s23, 1
      %p188 = por %p186, %p187
      %p189 = scmp.ne.s32.totalorder %s180, %s181
      %p190 = scmp.eq.s32.totalorder %s23, 0
      %p191 = por %p189, %p190
      %p192 = scmp.ne.s32.totalorder %s180, %s181
      %p193 = scmp.eq.s32.totalorder %s24, 1
      %p194 = por %p192, %p193
      %p196 = scmp.ne.s32.totalorder %s181, %s195
      %p197 = scmp.eq.s32.totalorder %s24, 0
      %p198 = por %p196, %p197
      %s199 = ssub.s32 %s18, %s25
      %p200 = scmp.eq.s32.totalorder %s199, 0
      %s202 = sadd.s32 %s201, 1
      %s203 = scalar_select %p200, %s201, %s202
      %p206 = pneg %p200
      %p207 = scmp.eq.s32.totalorder %s18, 1
      %p208 = por %p206, %p207
      %p209 = scmp.ne.s32.totalorder %s201, %s204
      %p210 = scmp.eq.s32.totalorder %s18, 0
      %p211 = por %p209, %p210
      %p212 = scmp.ne.s32.totalorder %s201, %s204
      %p213 = scmp.eq.s32.totalorder %s23, 1
      %p214 = por %p212, %p213
      %p215 = scmp.ne.s32.totalorder %s204, %s205
      %p216 = scmp.eq.s32.totalorder %s23, 0
      %p217 = por %p215, %p216
      %p218 = scmp.ne.s32.totalorder %s204, %s205
      %p219 = scmp.eq.s32.totalorder %s24, 1
      %p220 = por %p218, %p219
      %p222 = scmp.ne.s32.totalorder %s205, %s221
      %p223 = scmp.eq.s32.totalorder %s24, 0
      %p224 = por %p222, %p223
      %p225 = scmp.le.s32.totalorder 1, %s18
      %p226 = scmp.lt.s32.totalorder %s18, 3
      %p227 = pnand %p225, %p226
      %p228 = pneg %p227
      // Predicated region
      $region9: #{tpu_custom_call.1} parent=5 // pred_check
        _
      $region10: #{tpu_custom_call.1} parent=5 // pred_check_branch
        %230 = sbr.rel (%p227) target = $region12
      $region11: #{tpu_custom_call.1} parent=5 // pred_region
        %s231 = ssub.s32 %s18, 1
        // Predicated region
        $region13: #{tpu_custom_call.1} parent=11 // pred_check
          %p232 = pneg %p65
        $region14: #{tpu_custom_call.1} parent=11 // pred_check_branch
          %234 = sbr.rel (%p232) target = $region16
        $region15: #{tpu_custom_call.1} parent=11 // pred_region
          _
        $region16: #{tpu_custom_call.1} parent=11 // pred_fallthru
          _
        // Predicated region
        $region17: #{tpu_custom_call.1} parent=11 // pred_check
          %p235 = pneg %p86
        $region18: #{tpu_custom_call.1} parent=11 // pred_check_branch
          %237 = sbr.rel (%p235) target = $region20
        $region19: #{tpu_custom_call.1} parent=11 // pred_region
          _
        $region20: #{tpu_custom_call.1} parent=11 // pred_fallthru
          _
        // Predicated region
        $region21: #{tpu_custom_call.1} parent=11 // pred_check
          %p238 = pneg %p107
        $region22: #{tpu_custom_call.1} parent=11 // pred_check_branch
          %240 = sbr.rel (%p238) target = $region24
        $region23: #{tpu_custom_call.1} parent=11 // pred_region
          _
        $region24: #{tpu_custom_call.1} parent=11 // pred_fallthru
          _
        // Predicated region
        $region25: #{tpu_custom_call.1} parent=11 // pred_check
          %p241 = pneg %p128
        $region26: #{tpu_custom_call.1} parent=11 // pred_check_branch
          %243 = sbr.rel (%p241) target = $region28
        $region27: #{tpu_custom_call.1} parent=11 // pred_region
          %s245 = ssub.s32 128, 128
          %246 = vsyncadd [#allocation6], %s245
          %s248 = sshll.u32 [#allocation5], 4
          %s249 = int_to_ptr.vmem [resolvable:$true] %s248
          %251 = dma.hbm_to_vmem [thread:$0]  %s4, 128, %s249, [#allocation6]
        $region28: #{tpu_custom_call.1} parent=11 // pred_fallthru
          _
        // Predicated region
        $region29: #{tpu_custom_call.1} parent=11 // pred_check
          %p252 = pneg %p149
        $region30: #{tpu_custom_call.1} parent=11 // pred_check_branch
          %254 = sbr.rel (%p252) target = $region32
        $region31: #{tpu_custom_call.1} parent=11 // pred_region
          _
        $region32: #{tpu_custom_call.1} parent=11 // pred_fallthru
          _
        // Predicated region
        $region33: #{tpu_custom_call.1} parent=11 // pred_check
          %p255 = pneg %p170
        $region34: #{tpu_custom_call.1} parent=11 // pred_check_branch
          %257 = sbr.rel (%p255) target = $region36
        $region35: #{tpu_custom_call.1} parent=11 // pred_region
          _
        $region36: #{tpu_custom_call.1} parent=11 // pred_fallthru
          _
        // Predicated region
        $region37: #{tpu_custom_call.1} parent=11 // pred_check
          %p258 = pneg %p191
        $region38: #{tpu_custom_call.1} parent=11 // pred_check_branch
          %260 = sbr.rel (%p258) target = $region40
        $region39: #{tpu_custom_call.1} parent=11 // pred_region
          _
        $region40: #{tpu_custom_call.1} parent=11 // pred_fallthru
          _
      $region12: #{tpu_custom_call.1} parent=5 // pred_fallthru
        _
      %p261 = scmp.lt.s32.totalorder %s18, 2
      // Predicated region
      $region41: #{tpu_custom_call.1} parent=5 // pred_check
        %p262 = pneg %p261
      $region42: #{tpu_custom_call.1} parent=5 // pred_check_branch
        %264 = sbr.rel (%p262) target = $region44
      $region43: #{tpu_custom_call.1} parent=5 // pred_region
        // Predicated region
        $region45: #{tpu_custom_call.1} parent=43 // pred_check
          %p265 = pneg %p38
        $region46: #{tpu_custom_call.1} parent=43 // pred_check_branch
          %267 = sbr.rel (%p265) target = $region48
        $region47: #{tpu_custom_call.1} parent=43 // pred_region
          %p268 = scmp.lt.s32.totalorder %s18, 1
          %s269 = scalar_select %p268, %s18, 1
          %s270 = smul.addr %s269, 2
          %s271 = smul.addr %s270, 8
          %s272 = scalar_lea.vmem %s0, %s271
        $region48: #{tpu_custom_call.1} parent=43 // pred_fallthru
          _
      $region44: #{tpu_custom_call.1} parent=5 // pred_fallthru
        _
      %p273 = scmp.le.s32.totalorder 1, %s18
      %p274 = scmp.lt.s32.totalorder %s18, 3
      %p275 = pnand %p273, %p274
      %p276 = pneg %p275
      // Predicated region
      $region49: #{tpu_custom_call.1} parent=5 // pred_check
        _
      $region50: #{tpu_custom_call.1} parent=5 // pred_check_branch
        %278 = sbr.rel (%p275) target = $region52
      $region51: #{tpu_custom_call.1} parent=5 // pred_region
        %s279 = ssub.s32 %s18, 1
        // Predicated region
        $region53: #{tpu_custom_call.1} parent=51 // pred_check
          %p280 = pneg %p128
        $region54: #{tpu_custom_call.1} parent=51 // pred_check_branch
          %282 = sbr.rel (%p280) target = $region56
        $region55: #{tpu_custom_call.1} parent=51 // pred_region
          %283 = dma.done [#allocation6], 128
        $region56: #{tpu_custom_call.1} parent=51 // pred_fallthru
          _
        %p284 = scmp.lt.s32.totalorder %s23, 1
        %s285 = scalar_select %p284, %s23, 1
        %s286 = smul.addr %s285, 2
        %s287 = smul.addr %s286, 8
        %s288 = scalar_lea.vmem %s0, %s287
        %p289 = pneg %p44
        %p290 = pneg %p41
        %p291 = pneg %p65
        %p292 = pneg %p62
        %p293 = pneg %p86
        %p294 = pneg %p83
        %p295 = pneg %p107
        %p296 = pneg %p104
        %p297 = pneg %p128
        %p298 = pneg %p125
        %p299 = pneg %p149
        %p300 = pneg %p146
        %p301 = pneg %p170
        %p302 = pneg %p167
        %p303 = pneg %p191
        %p304 = pneg %p188
        %p305 = pneg %p217
        %p306 = pneg %p214
        %s307 = sand.u32 %s204, 1
        %s308 = scalar_lea.sflag [#allocation7], %s307
        %s309 = sand.u32 %s204, 1
        %s310 = smul.addr %s309, 16
        %s311 = scalar_lea.vmem [#allocation8], %s310
        %p312 = scmp.lt.s32.totalorder %s23, 1
        %s313 = scalar_select %p312, %s23, 1
        %s314 = smul.addr %s313, 2
        %s315 = smul.addr %s314, 8
        %s316 = scalar_lea.vmem %s0, %s315
        %vm317 = vcmask 1042304
        %318 = vst.msk [vmem:[#allocation2] sm:$0x3] %vm317, 0.0
        %319 = vst [vmem:[#allocation2 + $0x8] sm:$0x3] 0.0
        %vm320 = vcmask 123904
        %321 = vst.msk [vmem:[#allocation2 + $0x10] sm:$0x3] %vm320, 0.0
        %vm322 = vcmask 1044354
        %323 = vst.msk [vmem:[#allocation2 + $0x30] sm:$0xc] %vm322, 0.0
        %324 = vst [vmem:[#allocation2 + $0x38] sm:$0xc] 0.0
        %vm325 = vcmask 125954
        %326 = vst.msk [vmem:[#allocation2 + $0x40] sm:$0xc] %vm325, 0.0
        %vm327 = vcmask 1048450
        %328 = vst.msk [vmem:[#allocation2] sm:$0xfc] %vm327, 0.0
        %vm329 = vcmask 1048448
        %330 = vst.msk [vmem:[#allocation2 + $0x18] sm:$0xff] %vm329, 0.0
        %331 = vst.msk [vmem:[#allocation2 + $0x30] sm:$0x3] %vm317, 0.0
        %vm332 = vcmask 130050
        %333 = vst.msk [vmem:[#allocation2 + $0x10] sm:$0xfc] %vm332, 0.0
        %vm334 = vcmask 130048
        %335 = vst.msk [vmem:[#allocation2 + $0x28] sm:$0xff] %vm334, 0.0
        %336 = vst.msk [vmem:[#allocation2 + $0x40] sm:$0x3] %vm320, 0.0
        %v337 = vld [vmem:[%s316] sm:$0xff]
        %v338 = vld [vmem:[%s316 + $0x8] sm:$0xff]
        %vm341 = vcmask 1041408
        %v342 = vrot.slane %v337, 6
        %v343 = vrot.slane %v338, 6
        %v344 = vsel %vm341, %v342, %v343
        %348 = vst [vmem:[#allocation2 + $0x8] sm:$0xfc] %v342
        %349 = vst [vmem:[#allocation2 + $0x20] sm:$0xff] %v344
        %350 = vst [vmem:[#allocation2 + $0x38] sm:$0x3] %v343
        %v351 = vld [vmem:[%s3] sm:$0x1]
        %v352 = vld [vmem:[#allocation2] sm:$0xff]
        %v353 = vld [vmem:[#allocation2 + $0x8] sm:$0xff]
        %v354 = vld [vmem:[#allocation2 + $0x18] sm:$0xff]
        %v355 = vld [vmem:[#allocation2 + $0x20] sm:$0xff]
        %v356 = vld [vmem:[#allocation2 + $0x30] sm:$0xf]
        %v357 = vld [vmem:[#allocation2 + $0x38] sm:$0xf]
        %v358 = vld [vmem:[%s1] sm:$0x1]
        %v359 = vlaneseq
        %v360 = vshrl.u32 %v359, 7
        %v361 = vsub.s32 0, %v360
        %v362 = vrot.slane %v358, %v361
        %364 = vrot.lane.b32.xlu0 %v362, 120
        %v365 = vpop.permute.xlu0 %364
        %v367 = vmul.f32 %v352, %v365
        %v368 = vmul.f32 %v353, %v365
        %v369 = vmul.f32 %v354, %v365
        %v370 = vmul.f32 %v355, %v365
        %v371 = vmul.f32 %v356, %v365
        %v372 = vmul.f32 %v357, %v365
        %v373 = vadd.f32 %v367, 0.0
        %v374 = vadd.f32 %v368, 0.0
        %v375 = vadd.f32 %v369, 0.0
        %v376 = vadd.f32 %v370, 0.0
        %v377 = vadd.f32 %v371, 0.0
        %v378 = vadd.f32 %v372, 0.0
        %v379 = vld [vmem:[%s1 + $0x3] sm:$0x1]
        %v380 = vlaneseq
        %v381 = vshrl.u32 %v380, 7
        %v382 = vsub.s32 0, %v381
        %v383 = vrot.slane %v379, %v382
        %385 = vrot.lane.b32.xlu0 %v383, 120
        %v386 = vpop.permute.xlu0 %385
        %v388 = vmul.f32 %v352, %v386
        %v389 = vmul.f32 %v353, %v386
        %v390 = vmul.f32 %v354, %v386
        %v391 = vmul.f32 %v355, %v386
        %v392 = vmul.f32 %v356, %v386
        %v393 = vmul.f32 %v357, %v386
        %vm400 = vcmask 1046528
        %v401 = vrot.slane %v388, 1
        %v402 = vrot.slane %v390, 1
        %v403 = vsel %vm400, %v401, %v402
        %v404 = vrot.slane %v389, 1
        %v405 = vrot.slane %v391, 1
        %v406 = vsel %vm400, %v404, %v405
        %v407 = vrot.slane %v392, 1
        %v408 = vsel %vm400, %v402, %v407
        %v409 = vrot.slane %v393, 1
        %v410 = vsel %vm400, %v405, %v409
        %v417 = vadd.f32 %v373, %v403
        %v418 = vadd.f32 %v374, %v406
        %v419 = vadd.f32 %v375, %v408
        %v420 = vadd.f32 %v376, %v410
        %v421 = vadd.f32 %v377, %v407
        %v422 = vadd.f32 %v378, %v409
        %v423 = vld [vmem:[%s1 + $0x6] sm:$0x1]
        %v424 = vlaneseq
        %v425 = vshrl.u32 %v424, 7
        %v426 = vsub.s32 0, %v425
        %v427 = vrot.slane %v423, %v426
        %429 = vrot.lane.b32.xlu0 %v427, 120
        %v430 = vpop.permute.xlu0 %429
        %v432 = vmul.f32 %v352, %v430
        %v433 = vmul.f32 %v353, %v430
        %v434 = vmul.f32 %v354, %v430
        %v435 = vmul.f32 %v355, %v430
        %v436 = vmul.f32 %v356, %v430
        %v437 = vmul.f32 %v357, %v430
        %vm444 = vcmask 1045504
        %v445 = vrot.slane %v432, 2
        %v446 = vrot.slane %v434, 2
        %v447 = vsel %vm444, %v445, %v446
        %v448 = vrot.slane %v433, 2
        %v449 = vrot.slane %v435, 2
        %v450 = vsel %vm444, %v448, %v449
        %v451 = vrot.slane %v436, 2
        %v452 = vsel %vm444, %v446, %v451
        %v453 = vrot.slane %v437, 2
        %v454 = vsel %vm444, %v449, %v453
        %v461 = vadd.f32 %v417, %v447
        %v462 = vadd.f32 %v418, %v450
        %v463 = vadd.f32 %v419, %v452
        %v464 = vadd.f32 %v420, %v454
        %v465 = vadd.f32 %v421, %v451
        %v466 = vadd.f32 %v422, %v453
        %v467 = vld [vmem:[%s1 + $0x1] sm:$0x1]
        %v468 = vlaneseq
        %v469 = vshrl.u32 %v468, 7
        %v470 = vsub.s32 0, %v469
        %v471 = vrot.slane %v467, %v470
        %v472 = vmul.f32 %v353, %v471
        %v473 = vmul.f32 %v355, %v471
        %v474 = vmul.f32 %v357, %v471
        %478 = vrot.lane.b32.xlu0 %v472, 120
        %v479 = vpop.permute.xlu0 %478
        %480 = vrot.lane.b32.xlu0 %v473, 120
        %v481 = vpop.permute.xlu0 %480
        %482 = vrot.lane.b32.xlu0 %v474, 120
        %v483 = vpop.permute.xlu0 %482
        %v487 = vadd.f32 %v461, %v479
        %v488 = vadd.f32 %v462, %v479
        %v489 = vadd.f32 %v463, %v481
        %v490 = vadd.f32 %v464, %v481
        %v491 = vadd.f32 %v465, %v483
        %v492 = vadd.f32 %v466, %v483
        %v493 = vld [vmem:[%s1 + $0x4] sm:$0x1]
        %v494 = vlaneseq
        %v495 = vshrl.u32 %v494, 7
        %v496 = vsub.s32 0, %v495
        %v497 = vrot.slane %v493, %v496
        %v498 = vmul.f32 %v353, %v497
        %v499 = vmul.f32 %v355, %v497
        %v500 = vmul.f32 %v357, %v497
        %v504 = vrot.slane %v498, 1
        %v505 = vrot.slane %v499, 1
        %v506 = vsel %vm400, %v504, %v505
        %v507 = vrot.slane %v500, 1
        %v508 = vsel %vm400, %v505, %v507
        %509 = vrot.lane.b32.xlu0 %v506, 120
        %v510 = vpop.permute.xlu0 %509
        %511 = vrot.lane.b32.xlu0 %v508, 120
        %v512 = vpop.permute.xlu0 %511
        %513 = vrot.lane.b32.xlu0 %v507, 120
        %v514 = vpop.permute.xlu0 %513
        %v518 = vadd.f32 %v487, %v510
        %v519 = vadd.f32 %v488, %v510
        %v520 = vadd.f32 %v489, %v512
        %v521 = vadd.f32 %v490, %v512
        %v522 = vadd.f32 %v491, %v514
        %v523 = vadd.f32 %v492, %v514
        %v524 = vld [vmem:[%s1 + $0x7] sm:$0x1]
        %v525 = vlaneseq
        %v526 = vshrl.u32 %v525, 7
        %v527 = vsub.s32 0, %v526
        %v528 = vrot.slane %v524, %v527
        %v529 = vmul.f32 %v353, %v528
        %v530 = vmul.f32 %v355, %v528
        %v531 = vmul.f32 %v357, %v528
        %v535 = vrot.slane %v529, 2
        %v536 = vrot.slane %v530, 2
        %v537 = vsel %vm444, %v535, %v536
        %v538 = vrot.slane %v531, 2
        %v539 = vsel %vm444, %v536, %v538
        %540 = vrot.lane.b32.xlu0 %v537, 120
        %v541 = vpop.permute.xlu0 %540
        %542 = vrot.lane.b32.xlu0 %v539, 120
        %v543 = vpop.permute.xlu0 %542
        %544 = vrot.lane.b32.xlu0 %v538, 120
        %v545 = vpop.permute.xlu0 %544
        %v549 = vadd.f32 %v518, %v541
        %v550 = vadd.f32 %v519, %v541
        %v551 = vadd.f32 %v520, %v543
        %v552 = vadd.f32 %v521, %v543
        %v553 = vadd.f32 %v522, %v545
        %v554 = vadd.f32 %v523, %v545
        %v555 = vld [vmem:[#allocation2 + $0x10] sm:$0xff]
        %v556 = vld [vmem:[#allocation2 + $0x28] sm:$0xff]
        %v557 = vld [vmem:[#allocation2 + $0x40] sm:$0xf]
        %v558 = vld [vmem:[%s1 + $0x2] sm:$0x1]
        %v559 = vlaneseq
        %v560 = vshrl.u32 %v559, 7
        %v561 = vsub.s32 0, %v560
        %v562 = vrot.slane %v558, %v561
        %564 = vrot.lane.b32.xlu0 %v562, 8
        %v565 = vpop.permute.xlu0 %564
        %v567 = vmul.f32 %v353, %v565
        %v568 = vmul.f32 %v555, %v565
        %v569 = vmul.f32 %v355, %v565
        %v570 = vmul.f32 %v556, %v565
        %v571 = vmul.f32 %v357, %v565
        %v572 = vmul.f32 %v557, %v565
        %579 = vrot.lane.b32.xlu0 %v567, 112
        %v580 = vpop.permute.xlu0 %579
        %581 = vrot.lane.b32.xlu0 %v568, 112
        %v582 = vpop.permute.xlu0 %581
        %583 = vrot.lane.b32.xlu0 %v569, 112
        %v584 = vpop.permute.xlu0 %583
        %585 = vrot.lane.b32.xlu0 %v570, 112
        %v586 = vpop.permute.xlu0 %585
        %587 = vrot.lane.b32.xlu0 %v571, 112
        %v588 = vpop.permute.xlu0 %587
        %589 = vrot.lane.b32.xlu0 %v572, 112
        %v590 = vpop.permute.xlu0 %589
        %vm591 = vcmask 916480
        %v592 = vsel %vm591, %v580, %v582
        %v593 = vsel %vm591, %v584, %v586
        %v594 = vsel %vm591, %v588, %v590
        %v601 = vadd.f32 %v549, %v580
        %v602 = vadd.f32 %v550, %v592
        %v603 = vadd.f32 %v551, %v584
        %v604 = vadd.f32 %v552, %v593
        %v605 = vadd.f32 %v553, %v588
        %v606 = vadd.f32 %v554, %v594
        %v607 = vld [vmem:[%s1 + $0x5] sm:$0x1]
        %v608 = vlaneseq
        %v609 = vshrl.u32 %v608, 7
        %v610 = vsub.s32 0, %v609
        %v611 = vrot.slane %v607, %v610
        %613 = vrot.lane.b32.xlu0 %v611, 8
        %v614 = vpop.permute.xlu0 %613
        %v616 = vmul.f32 %v353, %v614
        %v617 = vmul.f32 %v555, %v614
        %v618 = vmul.f32 %v355, %v614
        %v619 = vmul.f32 %v556, %v614
        %v620 = vmul.f32 %v357, %v614
        %v621 = vmul.f32 %v557, %v614
        %v628 = vrot.slane %v616, 1
        %v629 = vrot.slane %v618, 1
        %v630 = vsel %vm400, %v628, %v629
        %v631 = vrot.slane %v617, 1
        %v632 = vrot.slane %v619, 1
        %v633 = vsel %vm400, %v631, %v632
        %v634 = vrot.slane %v620, 1
        %v635 = vsel %vm400, %v629, %v634
        %v636 = vrot.slane %v621, 1
        %v637 = vsel %vm400, %v632, %v636
        %638 = vrot.lane.b32.xlu0 %v630, 112
        %v639 = vpop.permute.xlu0 %638
        %640 = vrot.lane.b32.xlu0 %v633, 112
        %v641 = vpop.permute.xlu0 %640
        %642 = vrot.lane.b32.xlu0 %v635, 112
        %v643 = vpop.permute.xlu0 %642
        %644 = vrot.lane.b32.xlu0 %v637, 112
        %v645 = vpop.permute.xlu0 %644
        %646 = vrot.lane.b32.xlu0 %v634, 112
        %v647 = vpop.permute.xlu0 %646
        %648 = vrot.lane.b32.xlu0 %v636, 112
        %v649 = vpop.permute.xlu0 %648
        %v650 = vsel %vm591, %v639, %v641
        %v651 = vsel %vm591, %v643, %v645
        %v652 = vsel %vm591, %v647, %v649
        %v659 = vadd.f32 %v601, %v639
        %v660 = vadd.f32 %v602, %v650
        %v661 = vadd.f32 %v603, %v643
        %v662 = vadd.f32 %v604, %v651
        %v663 = vadd.f32 %v605, %v647
        %v664 = vadd.f32 %v606, %v652
        %v665 = vld [vmem:[%s1 + $0x8] sm:$0x1]
        %v666 = vlaneseq
        %v667 = vshrl.u32 %v666, 7
        %v668 = vsub.s32 0, %v667
        %v669 = vrot.slane %v665, %v668
        %671 = vrot.lane.b32.xlu0 %v669, 8
        %v672 = vpop.permute.xlu0 %671
        %v674 = vmul.f32 %v353, %v672
        %v675 = vmul.f32 %v555, %v672
        %v676 = vmul.f32 %v355, %v672
        %v677 = vmul.f32 %v556, %v672
        %v678 = vmul.f32 %v357, %v672
        %v679 = vmul.f32 %v557, %v672
        %v686 = vrot.slane %v674, 2
        %v687 = vrot.slane %v676, 2
        %v688 = vsel %vm444, %v686, %v687
        %v689 = vrot.slane %v675, 2
        %v690 = vrot.slane %v677, 2
        %v691 = vsel %vm444, %v689, %v690
        %v692 = vrot.slane %v678, 2
        %v693 = vsel %vm444, %v687, %v692
        %v694 = vrot.slane %v679, 2
        %v695 = vsel %vm444, %v690, %v694
        %696 = vrot.lane.b32.xlu0 %v688, 112
        %v697 = vpop.permute.xlu0 %696
        %698 = vrot.lane.b32.xlu0 %v691, 112
        %v699 = vpop.permute.xlu0 %698
        %700 = vrot.lane.b32.xlu0 %v693, 112
        %v701 = vpop.permute.xlu0 %700
        %702 = vrot.lane.b32.xlu0 %v695, 112
        %v703 = vpop.permute.xlu0 %702
        %704 = vrot.lane.b32.xlu0 %v692, 112
        %v705 = vpop.permute.xlu0 %704
        %706 = vrot.lane.b32.xlu0 %v694, 112
        %v707 = vpop.permute.xlu0 %706
        %v708 = vsel %vm591, %v697, %v699
        %v709 = vsel %vm591, %v701, %v703
        %v710 = vsel %vm591, %v705, %v707
        %v717 = vadd.f32 %v659, %v697
        %v718 = vadd.f32 %v660, %v708
        %v719 = vadd.f32 %v661, %v701
        %v720 = vadd.f32 %v662, %v709
        %v721 = vadd.f32 %v663, %v705
        %v722 = vadd.f32 %v664, %v710
        %v723 = vlaneseq
        %v724 = vshrl.u32 %v723, 7
        %v725 = vsub.s32 0, %v724
        %v726 = vrot.slane %v351, %v725
        %728 = vrot.lane.b32.xlu0 %v726, 120
        %v729 = vpop.permute.xlu0 %728
        %v731 = vadd.f32 %v717, %v729
        %v732 = vadd.f32 %v718, %v729
        %v733 = vadd.f32 %v719, %v729
        %v734 = vadd.f32 %v720, %v729
        %v735 = vadd.f32 %v721, %v729
        %v736 = vadd.f32 %v722, %v729
        %v737 = vmax.f32 %v731, 0.0
        %v738 = vmax.f32 %v732, 0.0
        %v739 = vmax.f32 %v733, 0.0
        %v740 = vmax.f32 %v734, 0.0
        %v741 = vmax.f32 %v735, 0.0
        %v742 = vmax.f32 %v736, 0.0
        %749 = vrot.lane.b32.xlu0 %v737, 8
        %v750 = vpop.permute.xlu0 %749
        %751 = vrot.lane.b32.xlu0 %v738, 8
        %v752 = vpop.permute.xlu0 %751
        %753 = vrot.lane.b32.xlu0 %v739, 8
        %v754 = vpop.permute.xlu0 %753
        %755 = vrot.lane.b32.xlu0 %v740, 8
        %v756 = vpop.permute.xlu0 %755
        %757 = vrot.lane.b32.xlu0 %v741, 8
        %v758 = vpop.permute.xlu0 %757
        %759 = vrot.lane.b32.xlu0 %v742, 8
        %v760 = vpop.permute.xlu0 %759
        %vm761 = vcmask 64512
        %v762 = vsel %vm761, %v750, %v752
        %v763 = vsel %vm761, %v754, %v756
        %v764 = vsel %vm761, %v758, %v760
        %768 = vst [vmem:[#allocation3 - $0x1] sm:$0xfe] %v762
        %769 = vst [vmem:[#allocation3 + $0x7] sm:$0xff] %v763
        %770 = vst [vmem:[#allocation3 + $0xf] sm:$0x1] %v764
        %v771 = vld [vmem:[%s3 + $0x1] sm:$0x1]
        %v772 = vld [vmem:[#allocation2] sm:$0xff]
        %v773 = vld [vmem:[#allocation2 + $0x8] sm:$0xff]
        %v774 = vld [vmem:[#allocation2 + $0x18] sm:$0xff]
        %v775 = vld [vmem:[#allocation2 + $0x20] sm:$0xff]
        %v776 = vld [vmem:[#allocation2 + $0x30] sm:$0xf]
        %v777 = vld [vmem:[#allocation2 + $0x38] sm:$0xf]
        %v778 = vld [vmem:[%s2] sm:$0x1]
        %v779 = vlaneseq
        %v780 = vshrl.u32 %v779, 7
        %v781 = vsub.s32 0, %v780
        %v782 = vrot.slane %v778, %v781
        %784 = vrot.lane.b32.xlu0 %v782, 112
        %v785 = vpop.permute.xlu0 %784
        %v787 = vmul.f32 %v772, %v785
        %v788 = vmul.f32 %v773, %v785
        %v789 = vmul.f32 %v774, %v785
        %v790 = vmul.f32 %v775, %v785
        %v791 = vadd.f32 %v787, 0.0
        %v792 = vadd.f32 %v788, 0.0
        %v793 = vadd.f32 %v789, 0.0
        %v794 = vadd.f32 %v790, 0.0
        %v795 = vld [vmem:[%s2 + $0x5] sm:$0x1]
        %v796 = vlaneseq
        %v797 = vshrl.u32 %v796, 7
        %v798 = vsub.s32 0, %v797
        %v799 = vrot.slane %v795, %v798
        %801 = vrot.lane.b32.xlu0 %v799, 112
        %v802 = vpop.permute.xlu0 %801
        %v804 = vmul.f32 %v772, %v802
        %v805 = vmul.f32 %v773, %v802
        %v806 = vmul.f32 %v774, %v802
        %v807 = vmul.f32 %v775, %v802
        %v808 = vmul.f32 %v776, %v802
        %v809 = vmul.f32 %v777, %v802
        %v816 = vrot.slane %v804, 1
        %v817 = vrot.slane %v806, 1
        %v818 = vsel %vm400, %v816, %v817
        %v819 = vrot.slane %v805, 1
        %v820 = vrot.slane %v807, 1
        %v821 = vsel %vm400, %v819, %v820
        %v822 = vrot.slane %v808, 1
        %v823 = vsel %vm400, %v817, %v822
        %v824 = vrot.slane %v809, 1
        %v825 = vsel %vm400, %v820, %v824
        %v830 = vadd.f32 %v791, %v818
        %v831 = vadd.f32 %v792, %v821
        %v832 = vadd.f32 %v793, %v823
        %v833 = vadd.f32 %v794, %v825
        %v834 = vld [vmem:[%s2 + $0xa] sm:$0x1]
        %v835 = vlaneseq
        %v836 = vshrl.u32 %v835, 7
        %v837 = vsub.s32 0, %v836
        %v838 = vrot.slane %v834, %v837
        %840 = vrot.lane.b32.xlu0 %v838, 112
        %v841 = vpop.permute.xlu0 %840
        %v843 = vmul.f32 %v772, %v841
        %v844 = vmul.f32 %v773, %v841
        %v845 = vmul.f32 %v774, %v841
        %v846 = vmul.f32 %v775, %v841
        %v847 = vmul.f32 %v776, %v841
        %v848 = vmul.f32 %v777, %v841
        %v855 = vrot.slane %v843, 2
        %v856 = vrot.slane %v845, 2
        %v857 = vsel %vm444, %v855, %v856
        %v858 = vrot.slane %v844, 2
        %v859 = vrot.slane %v846, 2
        %v860 = vsel %vm444, %v858, %v859
        %v861 = vrot.slane %v847, 2
        %v862 = vsel %vm444, %v856, %v861
        %v863 = vrot.slane %v848, 2
        %v864 = vsel %vm444, %v859, %v863
        %v869 = vadd.f32 %v830, %v857
        %v870 = vadd.f32 %v831, %v860
        %v871 = vadd.f32 %v832, %v862
        %v872 = vadd.f32 %v833, %v864
        %v873 = vld [vmem:[%s2 + $0xf] sm:$0x1]
        %v874 = vlaneseq
        %v875 = vshrl.u32 %v874, 7
        %v876 = vsub.s32 0, %v875
        %v877 = vrot.slane %v873, %v876
        %879 = vrot.lane.b32.xlu0 %v877, 112
        %v880 = vpop.permute.xlu0 %879
        %v882 = vmul.f32 %v772, %v880
        %v883 = vmul.f32 %v773, %v880
        %v884 = vmul.f32 %v774, %v880
        %v885 = vmul.f32 %v775, %v880
        %v886 = vmul.f32 %v776, %v880
        %v887 = vmul.f32 %v777, %v880
        %vm894 = vcmask 1044480
        %v895 = vrot.slane %v882, 3
        %v896 = vrot.slane %v884, 3
        %v897 = vsel %vm894, %v895, %v896
        %v898 = vrot.slane %v883, 3
        %v899 = vrot.slane %v885, 3
        %v900 = vsel %vm894, %v898, %v899
        %v901 = vrot.slane %v886, 3
        %v902 = vsel %vm894, %v896, %v901
        %v903 = vrot.slane %v887, 3
        %v904 = vsel %vm894, %v899, %v903
        %v909 = vadd.f32 %v869, %v897
        %v910 = vadd.f32 %v870, %v900
        %v911 = vadd.f32 %v871, %v902
        %v912 = vadd.f32 %v872, %v904
        %v913 = vld [vmem:[%s2 + $0x14] sm:$0x1]
        %v914 = vlaneseq
        %v915 = vshrl.u32 %v914, 7
        %v916 = vsub.s32 0, %v915
        %v917 = vrot.slane %v913, %v916
        %919 = vrot.lane.b32.xlu0 %v917, 112
        %v920 = vpop.permute.xlu0 %919
        %v922 = vmul.f32 %v772, %v920
        %v923 = vmul.f32 %v773, %v920
        %v924 = vmul.f32 %v774, %v920
        %v925 = vmul.f32 %v775, %v920
        %v926 = vmul.f32 %v776, %v920
        %v927 = vmul.f32 %v777, %v920
        %vm934 = vcmask 1043456
        %v935 = vrot.slane %v922, 4
        %v936 = vrot.slane %v924, 4
        %v937 = vsel %vm934, %v935, %v936
        %v938 = vrot.slane %v923, 4
        %v939 = vrot.slane %v925, 4
        %v940 = vsel %vm934, %v938, %v939
        %v941 = vrot.slane %v926, 4
        %v942 = vsel %vm934, %v936, %v941
        %v943 = vrot.slane %v927, 4
        %v944 = vsel %vm934, %v939, %v943
        %v949 = vadd.f32 %v909, %v937
        %v950 = vadd.f32 %v910, %v940
        %v951 = vadd.f32 %v911, %v942
        %v952 = vadd.f32 %v912, %v944
        %v953 = vld [vmem:[%s2 + $0x1] sm:$0x1]
        %v954 = vlaneseq
        %v955 = vshrl.u32 %v954, 7
        %v956 = vsub.s32 0, %v955
        %v957 = vrot.slane %v953, %v956
        %959 = vrot.lane.b32.xlu0 %v957, 120
        %v960 = vpop.permute.xlu0 %959
        %v962 = vmul.f32 %v772, %v960
        %v963 = vmul.f32 %v773, %v960
        %v964 = vmul.f32 %v774, %v960
        %v965 = vmul.f32 %v775, %v960
        %970 = vrot.lane.b32.xlu0 %v962, 120
        %v971 = vpop.permute.xlu0 %970
        %972 = vrot.lane.b32.xlu0 %v963, 120
        %v973 = vpop.permute.xlu0 %972
        %974 = vrot.lane.b32.xlu0 %v964, 120
        %v975 = vpop.permute.xlu0 %974
        %976 = vrot.lane.b32.xlu0 %v965, 120
        %v977 = vpop.permute.xlu0 %976
        %vm978 = vcmask 982016
        %v979 = vsel %vm978, %v971, %v973
        %v980 = vsel %vm978, %v975, %v977
        %v985 = vadd.f32 %v949, %v979
        %v986 = vadd.f32 %v950, %v973
        %v987 = vadd.f32 %v951, %v980
        %v988 = vadd.f32 %v952, %v977
        %v989 = vld [vmem:[%s2 + $0x6] sm:$0x1]
        %v990 = vlaneseq
        %v991 = vshrl.u32 %v990, 7
        %v992 = vsub.s32 0, %v991
        %v993 = vrot.slane %v989, %v992
        %995 = vrot.lane.b32.xlu0 %v993, 120
        %v996 = vpop.permute.xlu0 %995
        %v998 = vmul.f32 %v772, %v996
        %v999 = vmul.f32 %v773, %v996
        %v1000 = vmul.f32 %v774, %v996
        %v1001 = vmul.f32 %v775, %v996
        %v1002 = vmul.f32 %v776, %v996
        %v1003 = vmul.f32 %v777, %v996
        %v1010 = vrot.slane %v998, 1
        %v1011 = vrot.slane %v1000, 1
        %v1012 = vsel %vm400, %v1010, %v1011
        %v1013 = vrot.slane %v999, 1
        %v1014 = vrot.slane %v1001, 1
        %v1015 = vsel %vm400, %v1013, %v1014
        %v1016 = vrot.slane %v1002, 1
        %v1017 = vsel %vm400, %v1011, %v1016
        %v1018 = vrot.slane %v1003, 1
        %v1019 = vsel %vm400, %v1014, %v1018
        %1020 = vrot.lane.b32.xlu0 %v1012, 120
        %v1021 = vpop.permute.xlu0 %1020
        %1022 = vrot.lane.b32.xlu0 %v1015, 120
        %v1023 = vpop.permute.xlu0 %1022
        %1024 = vrot.lane.b32.xlu0 %v1017, 120
        %v1025 = vpop.permute.xlu0 %1024
        %1026 = vrot.lane.b32.xlu0 %v1019, 120
        %v1027 = vpop.permute.xlu0 %1026
        %v1028 = vsel %vm978, %v1021, %v1023
        %v1029 = vsel %vm978, %v1025, %v1027
        %v1034 = vadd.f32 %v985, %v1028
        %v1035 = vadd.f32 %v986, %v1023
        %v1036 = vadd.f32 %v987, %v1029
        %v1037 = vadd.f32 %v988, %v1027
        %v1038 = vld [vmem:[%s2 + $0xb] sm:$0x1]
        %v1039 = vlaneseq
        %v1040 = vshrl.u32 %v1039, 7
        %v1041 = vsub.s32 0, %v1040
        %v1042 = vrot.slane %v1038, %v1041
        %1044 = vrot.lane.b32.xlu0 %v1042, 120
        %v1045 = vpop.permute.xlu0 %1044
        %v1047 = vmul.f32 %v772, %v1045
        %v1048 = vmul.f32 %v773, %v1045
        %v1049 = vmul.f32 %v774, %v1045
        %v1050 = vmul.f32 %v775, %v1045
        %v1051 = vmul.f32 %v776, %v1045
        %v1052 = vmul.f32 %v777, %v1045
        %v1059 = vrot.slane %v1047, 2
        %v1060 = vrot.slane %v1049, 2
        %v1061 = vsel %vm444, %v1059, %v1060
        %v1062 = vrot.slane %v1048, 2
        %v1063 = vrot.slane %v1050, 2
        %v1064 = vsel %vm444, %v1062, %v1063
        %v1065 = vrot.slane %v1051, 2
        %v1066 = vsel %vm444, %v1060, %v1065
        %v1067 = vrot.slane %v1052, 2
        %v1068 = vsel %vm444, %v1063, %v1067
        %1069 = vrot.lane.b32.xlu0 %v1061, 120
        %v1070 = vpop.permute.xlu0 %1069
        %1071 = vrot.lane.b32.xlu0 %v1064, 120
        %v1072 = vpop.permute.xlu0 %1071
        %1073 = vrot.lane.b32.xlu0 %v1066, 120
        %v1074 = vpop.permute.xlu0 %1073
        %1075 = vrot.lane.b32.xlu0 %v1068, 120
        %v1076 = vpop.permute.xlu0 %1075
        %v1077 = vsel %vm978, %v1070, %v1072
        %v1078 = vsel %vm978, %v1074, %v1076
        %v1083 = vadd.f32 %v1034, %v1077
        %v1084 = vadd.f32 %v1035, %v1072
        %v1085 = vadd.f32 %v1036, %v1078
        %v1086 = vadd.f32 %v1037, %v1076
        %v1087 = vld [vmem:[%s2 + $0x10] sm:$0x1]
        %v1088 = vlaneseq
        %v1089 = vshrl.u32 %v1088, 7
        %v1090 = vsub.s32 0, %v1089
        %v1091 = vrot.slane %v1087, %v1090
        %1093 = vrot.lane.b32.xlu0 %v1091, 120
        %v1094 = vpop.permute.xlu0 %1093
        %v1096 = vmul.f32 %v772, %v1094
        %v1097 = vmul.f32 %v773, %v1094
        %v1098 = vmul.f32 %v774, %v1094
        %v1099 = vmul.f32 %v775, %v1094
        %v1100 = vmul.f32 %v776, %v1094
        %v1101 = vmul.f32 %v777, %v1094
        %v1108 = vrot.slane %v1096, 3
        %v1109 = vrot.slane %v1098, 3
        %v1110 = vsel %vm894, %v1108, %v1109
        %v1111 = vrot.slane %v1097, 3
        %v1112 = vrot.slane %v1099, 3
        %v1113 = vsel %vm894, %v1111, %v1112
        %v1114 = vrot.slane %v1100, 3
        %v1115 = vsel %vm894, %v1109, %v1114
        %v1116 = vrot.slane %v1101, 3
        %v1117 = vsel %vm894, %v1112, %v1116
        %1118 = vrot.lane.b32.xlu0 %v1110, 120
        %v1119 = vpop.permute.xlu0 %1118
        %1120 = vrot.lane.b32.xlu0 %v1113, 120
        %v1121 = vpop.permute.xlu0 %1120
        %1122 = vrot.lane.b32.xlu0 %v1115, 120
        %v1123 = vpop.permute.xlu0 %1122
        %1124 = vrot.lane.b32.xlu0 %v1117, 120
        %v1125 = vpop.permute.xlu0 %1124
        %v1126 = vsel %vm978, %v1119, %v1121
        %v1127 = vsel %vm978, %v1123, %v1125
        %v1132 = vadd.f32 %v1083, %v1126
        %v1133 = vadd.f32 %v1084, %v1121
        %v1134 = vadd.f32 %v1085, %v1127
        %v1135 = vadd.f32 %v1086, %v1125
        %v1136 = vld [vmem:[%s2 + $0x15] sm:$0x1]
        %v1137 = vlaneseq
        %v1138 = vshrl.u32 %v1137, 7
        %v1139 = vsub.s32 0, %v1138
        %v1140 = vrot.slane %v1136, %v1139
        %1142 = vrot.lane.b32.xlu0 %v1140, 120
        %v1143 = vpop.permute.xlu0 %1142
        %v1145 = vmul.f32 %v772, %v1143
        %v1146 = vmul.f32 %v773, %v1143
        %v1147 = vmul.f32 %v774, %v1143
        %v1148 = vmul.f32 %v775, %v1143
        %v1149 = vmul.f32 %v776, %v1143
        %v1150 = vmul.f32 %v777, %v1143
        %v1157 = vrot.slane %v1145, 4
        %v1158 = vrot.slane %v1147, 4
        %v1159 = vsel %vm934, %v1157, %v1158
        %v1160 = vrot.slane %v1146, 4
        %v1161 = vrot.slane %v1148, 4
        %v1162 = vsel %vm934, %v1160, %v1161
        %v1163 = vrot.slane %v1149, 4
        %v1164 = vsel %vm934, %v1158, %v1163
        %v1165 = vrot.slane %v1150, 4
        %v1166 = vsel %vm934, %v1161, %v1165
        %1167 = vrot.lane.b32.xlu0 %v1159, 120
        %v1168 = vpop.permute.xlu0 %1167
        %1169 = vrot.lane.b32.xlu0 %v1162, 120
        %v1170 = vpop.permute.xlu0 %1169
        %1171 = vrot.lane.b32.xlu0 %v1164, 120
        %v1172 = vpop.permute.xlu0 %1171
        %1173 = vrot.lane.b32.xlu0 %v1166, 120
        %v1174 = vpop.permute.xlu0 %1173
        %v1175 = vsel %vm978, %v1168, %v1170
        %v1176 = vsel %vm978, %v1172, %v1174
        %v1181 = vadd.f32 %v1132, %v1175
        %v1182 = vadd.f32 %v1133, %v1170
        %v1183 = vadd.f32 %v1134, %v1176
        %v1184 = vadd.f32 %v1135, %v1174
        %v1185 = vld [vmem:[%s2 + $0x2] sm:$0x1]
        %v1186 = vlaneseq
        %v1187 = vshrl.u32 %v1186, 7
        %v1188 = vsub.s32 0, %v1187
        %v1189 = vrot.slane %v1185, %v1188
        %v1190 = vmul.f32 %v773, %v1189
        %v1191 = vmul.f32 %v775, %v1189
        %1194 = vrot.lane.b32.xlu0 %v1190, 112
        %v1195 = vpop.permute.xlu0 %1194
        %1196 = vrot.lane.b32.xlu0 %v1191, 112
        %v1197 = vpop.permute.xlu0 %1196
        %v1200 = vadd.f32 %v1181, %v1195
        %v1201 = vadd.f32 %v1182, %v1195
        %v1202 = vadd.f32 %v1183, %v1197
        %v1203 = vadd.f32 %v1184, %v1197
        %v1204 = vld [vmem:[%s2 + $0x7] sm:$0x1]
        %v1205 = vlaneseq
        %v1206 = vshrl.u32 %v1205, 7
        %v1207 = vsub.s32 0, %v1206
        %v1208 = vrot.slane %v1204, %v1207
        %v1209 = vmul.f32 %v773, %v1208
        %v1210 = vmul.f32 %v775, %v1208
        %v1211 = vmul.f32 %v777, %v1208
        %v1215 = vrot.slane %v1209, 1
        %v1216 = vrot.slane %v1210, 1
        %v1217 = vsel %vm400, %v1215, %v1216
        %v1218 = vrot.slane %v1211, 1
        %v1219 = vsel %vm400, %v1216, %v1218
        %1220 = vrot.lane.b32.xlu0 %v1217, 112
        %v1221 = vpop.permute.xlu0 %1220
        %1222 = vrot.lane.b32.xlu0 %v1219, 112
        %v1223 = vpop.permute.xlu0 %1222
        %v1226 = vadd.f32 %v1200, %v1221
        %v1227 = vadd.f32 %v1201, %v1221
        %v1228 = vadd.f32 %v1202, %v1223
        %v1229 = vadd.f32 %v1203, %v1223
        %v1230 = vld [vmem:[%s2 + $0xc] sm:$0x1]
        %v1231 = vlaneseq
        %v1232 = vshrl.u32 %v1231, 7
        %v1233 = vsub.s32 0, %v1232
        %v1234 = vrot.slane %v1230, %v1233
        %v1235 = vmul.f32 %v773, %v1234
        %v1236 = vmul.f32 %v775, %v1234
        %v1237 = vmul.f32 %v777, %v1234
        %v1241 = vrot.slane %v1235, 2
        %v1242 = vrot.slane %v1236, 2
        %v1243 = vsel %vm444, %v1241, %v1242
        %v1244 = vrot.slane %v1237, 2
        %v1245 = vsel %vm444, %v1242, %v1244
        %1246 = vrot.lane.b32.xlu0 %v1243, 112
        %v1247 = vpop.permute.xlu0 %1246
        %1248 = vrot.lane.b32.xlu0 %v1245, 112
        %v1249 = vpop.permute.xlu0 %1248
        %v1252 = vadd.f32 %v1226, %v1247
        %v1253 = vadd.f32 %v1227, %v1247
        %v1254 = vadd.f32 %v1228, %v1249
        %v1255 = vadd.f32 %v1229, %v1249
        %v1256 = vld [vmem:[%s2 + $0x11] sm:$0x1]
        %v1257 = vlaneseq
        %v1258 = vshrl.u32 %v1257, 7
        %v1259 = vsub.s32 0, %v1258
        %v1260 = vrot.slane %v1256, %v1259
        %v1261 = vmul.f32 %v773, %v1260
        %v1262 = vmul.f32 %v775, %v1260
        %v1263 = vmul.f32 %v777, %v1260
        %v1267 = vrot.slane %v1261, 3
        %v1268 = vrot.slane %v1262, 3
        %v1269 = vsel %vm894, %v1267, %v1268
        %v1270 = vrot.slane %v1263, 3
        %v1271 = vsel %vm894, %v1268, %v1270
        %1272 = vrot.lane.b32.xlu0 %v1269, 112
        %v1273 = vpop.permute.xlu0 %1272
        %1274 = vrot.lane.b32.xlu0 %v1271, 112
        %v1275 = vpop.permute.xlu0 %1274
        %v1278 = vadd.f32 %v1252, %v1273
        %v1279 = vadd.f32 %v1253, %v1273
        %v1280 = vadd.f32 %v1254, %v1275
        %v1281 = vadd.f32 %v1255, %v1275
        %v1282 = vld [vmem:[%s2 + $0x16] sm:$0x1]
        %v1283 = vlaneseq
        %v1284 = vshrl.u32 %v1283, 7
        %v1285 = vsub.s32 0, %v1284
        %v1286 = vrot.slane %v1282, %v1285
        %v1287 = vmul.f32 %v773, %v1286
        %v1288 = vmul.f32 %v775, %v1286
        %v1289 = vmul.f32 %v777, %v1286
        %v1293 = vrot.slane %v1287, 4
        %v1294 = vrot.slane %v1288, 4
        %v1295 = vsel %vm934, %v1293, %v1294
        %v1296 = vrot.slane %v1289, 4
        %v1297 = vsel %vm934, %v1294, %v1296
        %1298 = vrot.lane.b32.xlu0 %v1295, 112
        %v1299 = vpop.permute.xlu0 %1298
        %1300 = vrot.lane.b32.xlu0 %v1297, 112
        %v1301 = vpop.permute.xlu0 %1300
        %v1304 = vadd.f32 %v1278, %v1299
        %v1305 = vadd.f32 %v1279, %v1299
        %v1306 = vadd.f32 %v1280, %v1301
        %v1307 = vadd.f32 %v1281, %v1301
        %v1308 = vld [vmem:[#allocation2 + $0x10] sm:$0xff]
        %v1309 = vld [vmem:[#allocation2 + $0x28] sm:$0xff]
        %v1310 = vld [vmem:[#allocation2 + $0x40] sm:$0xf]
        %v1311 = vld [vmem:[%s2 + $0x3] sm:$0x1]
        %v1312 = vlaneseq
        %v1313 = vshrl.u32 %v1312, 7
        %v1314 = vsub.s32 0, %v1313
        %v1315 = vrot.slane %v1311, %v1314
        %1317 = vrot.lane.b32.xlu0 %v1315, 8
        %v1318 = vpop.permute.xlu0 %1317
        %v1320 = vmul.f32 %v773, %v1318
        %v1321 = vmul.f32 %v1308, %v1318
        %v1322 = vmul.f32 %v775, %v1318
        %v1323 = vmul.f32 %v1309, %v1318
        %1328 = vrot.lane.b32.xlu0 %v1320, 104
        %v1329 = vpop.permute.xlu0 %1328
        %1330 = vrot.lane.b32.xlu0 %v1321, 104
        %v1331 = vpop.permute.xlu0 %1330
        %1332 = vrot.lane.b32.xlu0 %v1322, 104
        %v1333 = vpop.permute.xlu0 %1332
        %1334 = vrot.lane.b32.xlu0 %v1323, 104
        %v1335 = vpop.permute.xlu0 %1334
        %vm1336 = vcmask 850944
        %v1337 = vsel %vm1336, %v1329, %v1331
        %v1338 = vsel %vm1336, %v1333, %v1335
        %v1343 = vadd.f32 %v1304, %v1329
        %v1344 = vadd.f32 %v1305, %v1337
        %v1345 = vadd.f32 %v1306, %v1333
        %v1346 = vadd.f32 %v1307, %v1338
        %v1347 = vld [vmem:[%s2 + $0x8] sm:$0x1]
        %v1348 = vlaneseq
        %v1349 = vshrl.u32 %v1348, 7
        %v1350 = vsub.s32 0, %v1349
        %v1351 = vrot.slane %v1347, %v1350
        %1353 = vrot.lane.b32.xlu0 %v1351, 8
        %v1354 = vpop.permute.xlu0 %1353
        %v1356 = vmul.f32 %v773, %v1354
        %v1357 = vmul.f32 %v1308, %v1354
        %v1358 = vmul.f32 %v775, %v1354
        %v1359 = vmul.f32 %v1309, %v1354
        %v1360 = vmul.f32 %v777, %v1354
        %v1361 = vmul.f32 %v1310, %v1354
        %v1368 = vrot.slane %v1356, 1
        %v1369 = vrot.slane %v1358, 1
        %v1370 = vsel %vm400, %v1368, %v1369
        %v1371 = vrot.slane %v1357, 1
        %v1372 = vrot.slane %v1359, 1
        %v1373 = vsel %vm400, %v1371, %v1372
        %v1374 = vrot.slane %v1360, 1
        %v1375 = vsel %vm400, %v1369, %v1374
        %v1376 = vrot.slane %v1361, 1
        %v1377 = vsel %vm400, %v1372, %v1376
        %1378 = vrot.lane.b32.xlu0 %v1370, 104
        %v1379 = vpop.permute.xlu0 %1378
        %1380 = vrot.lane.b32.xlu0 %v1373, 104
        %v1381 = vpop.permute.xlu0 %1380
        %1382 = vrot.lane.b32.xlu0 %v1375, 104
        %v1383 = vpop.permute.xlu0 %1382
        %1384 = vrot.lane.b32.xlu0 %v1377, 104
        %v1385 = vpop.permute.xlu0 %1384
        %v1386 = vsel %vm1336, %v1379, %v1381
        %v1387 = vsel %vm1336, %v1383, %v1385
        %v1392 = vadd.f32 %v1343, %v1379
        %v1393 = vadd.f32 %v1344, %v1386
        %v1394 = vadd.f32 %v1345, %v1383
        %v1395 = vadd.f32 %v1346, %v1387
        %v1396 = vld [vmem:[%s2 + $0xd] sm:$0x1]
        %v1397 = vlaneseq
        %v1398 = vshrl.u32 %v1397, 7
        %v1399 = vsub.s32 0, %v1398
        %v1400 = vrot.slane %v1396, %v1399
        %1402 = vrot.lane.b32.xlu0 %v1400, 8
        %v1403 = vpop.permute.xlu0 %1402
        %v1405 = vmul.f32 %v773, %v1403
        %v1406 = vmul.f32 %v1308, %v1403
        %v1407 = vmul.f32 %v775, %v1403
        %v1408 = vmul.f32 %v1309, %v1403
        %v1409 = vmul.f32 %v777, %v1403
        %v1410 = vmul.f32 %v1310, %v1403
        %v1417 = vrot.slane %v1405, 2
        %v1418 = vrot.slane %v1407, 2
        %v1419 = vsel %vm444, %v1417, %v1418
        %v1420 = vrot.slane %v1406, 2
        %v1421 = vrot.slane %v1408, 2
        %v1422 = vsel %vm444, %v1420, %v1421
        %v1423 = vrot.slane %v1409, 2
        %v1424 = vsel %vm444, %v1418, %v1423
        %v1425 = vrot.slane %v1410, 2
        %v1426 = vsel %vm444, %v1421, %v1425
        %1427 = vrot.lane.b32.xlu0 %v1419, 104
        %v1428 = vpop.permute.xlu0 %1427
        %1429 = vrot.lane.b32.xlu0 %v1422, 104
        %v1430 = vpop.permute.xlu0 %1429
        %1431 = vrot.lane.b32.xlu0 %v1424, 104
        %v1432 = vpop.permute.xlu0 %1431
        %1433 = vrot.lane.b32.xlu0 %v1426, 104
        %v1434 = vpop.permute.xlu0 %1433
        %v1435 = vsel %vm1336, %v1428, %v1430
        %v1436 = vsel %vm1336, %v1432, %v1434
        %v1441 = vadd.f32 %v1392, %v1428
        %v1442 = vadd.f32 %v1393, %v1435
        %v1443 = vadd.f32 %v1394, %v1432
        %v1444 = vadd.f32 %v1395, %v1436
        %v1445 = vld [vmem:[%s2 + $0x12] sm:$0x1]
        %v1446 = vlaneseq
        %v1447 = vshrl.u32 %v1446, 7
        %v1448 = vsub.s32 0, %v1447
        %v1449 = vrot.slane %v1445, %v1448
        %1451 = vrot.lane.b32.xlu0 %v1449, 8
        %v1452 = vpop.permute.xlu0 %1451
        %v1454 = vmul.f32 %v773, %v1452
        %v1455 = vmul.f32 %v1308, %v1452
        %v1456 = vmul.f32 %v775, %v1452
        %v1457 = vmul.f32 %v1309, %v1452
        %v1458 = vmul.f32 %v777, %v1452
        %v1459 = vmul.f32 %v1310, %v1452
        %v1466 = vrot.slane %v1454, 3
        %v1467 = vrot.slane %v1456, 3
        %v1468 = vsel %vm894, %v1466, %v1467
        %v1469 = vrot.slane %v1455, 3
        %v1470 = vrot.slane %v1457, 3
        %v1471 = vsel %vm894, %v1469, %v1470
        %v1472 = vrot.slane %v1458, 3
        %v1473 = vsel %vm894, %v1467, %v1472
        %v1474 = vrot.slane %v1459, 3
        %v1475 = vsel %vm894, %v1470, %v1474
        %1476 = vrot.lane.b32.xlu0 %v1468, 104
        %v1477 = vpop.permute.xlu0 %1476
        %1478 = vrot.lane.b32.xlu0 %v1471, 104
        %v1479 = vpop.permute.xlu0 %1478
        %1480 = vrot.lane.b32.xlu0 %v1473, 104
        %v1481 = vpop.permute.xlu0 %1480
        %1482 = vrot.lane.b32.xlu0 %v1475, 104
        %v1483 = vpop.permute.xlu0 %1482
        %v1484 = vsel %vm1336, %v1477, %v1479
        %v1485 = vsel %vm1336, %v1481, %v1483
        %v1490 = vadd.f32 %v1441, %v1477
        %v1491 = vadd.f32 %v1442, %v1484
        %v1492 = vadd.f32 %v1443, %v1481
        %v1493 = vadd.f32 %v1444, %v1485
        %v1494 = vld [vmem:[%s2 + $0x17] sm:$0x1]
        %v1495 = vlaneseq
        %v1496 = vshrl.u32 %v1495, 7
        %v1497 = vsub.s32 0, %v1496
        %v1498 = vrot.slane %v1494, %v1497
        %1500 = vrot.lane.b32.xlu0 %v1498, 8
        %v1501 = vpop.permute.xlu0 %1500
        %v1503 = vmul.f32 %v773, %v1501
        %v1504 = vmul.f32 %v1308, %v1501
        %v1505 = vmul.f32 %v775, %v1501
        %v1506 = vmul.f32 %v1309, %v1501
        %v1507 = vmul.f32 %v777, %v1501
        %v1508 = vmul.f32 %v1310, %v1501
        %v1515 = vrot.slane %v1503, 4
        %v1516 = vrot.slane %v1505, 4
        %v1517 = vsel %vm934, %v1515, %v1516
        %v1518 = vrot.slane %v1504, 4
        %v1519 = vrot.slane %v1506, 4
        %v1520 = vsel %vm934, %v1518, %v1519
        %v1521 = vrot.slane %v1507, 4
        %v1522 = vsel %vm934, %v1516, %v1521
        %v1523 = vrot.slane %v1508, 4
        %v1524 = vsel %vm934, %v1519, %v1523
        %1525 = vrot.lane.b32.xlu0 %v1517, 104
        %v1526 = vpop.permute.xlu0 %1525
        %1527 = vrot.lane.b32.xlu0 %v1520, 104
        %v1528 = vpop.permute.xlu0 %1527
        %1529 = vrot.lane.b32.xlu0 %v1522, 104
        %v1530 = vpop.permute.xlu0 %1529
        %1531 = vrot.lane.b32.xlu0 %v1524, 104
        %v1532 = vpop.permute.xlu0 %1531
        %v1533 = vsel %vm1336, %v1526, %v1528
        %v1534 = vsel %vm1336, %v1530, %v1532
        %v1539 = vadd.f32 %v1490, %v1526
        %v1540 = vadd.f32 %v1491, %v1533
        %v1541 = vadd.f32 %v1492, %v1530
        %v1542 = vadd.f32 %v1493, %v1534
        %v1543 = vld [vmem:[%s2 + $0x4] sm:$0x1]
        %v1544 = vlaneseq
        %v1545 = vshrl.u32 %v1544, 7
        %v1546 = vsub.s32 0, %v1545
        %v1547 = vrot.slane %v1543, %v1546
        %1549 = vrot.lane.b32.xlu0 %v1547, 16
        %v1550 = vpop.permute.xlu0 %1549
        %v1552 = vmul.f32 %v773, %v1550
        %v1553 = vmul.f32 %v1308, %v1550
        %v1554 = vmul.f32 %v775, %v1550
        %v1555 = vmul.f32 %v1309, %v1550
        %1560 = vrot.lane.b32.xlu0 %v1552, 96
        %v1561 = vpop.permute.xlu0 %1560
        %1562 = vrot.lane.b32.xlu0 %v1553, 96
        %v1563 = vpop.permute.xlu0 %1562
        %1564 = vrot.lane.b32.xlu0 %v1554, 96
        %v1565 = vpop.permute.xlu0 %1564
        %1566 = vrot.lane.b32.xlu0 %v1555, 96
        %v1567 = vpop.permute.xlu0 %1566
        %vm1568 = vcmask 785408
        %v1569 = vsel %vm1568, %v1561, %v1563
        %v1570 = vsel %vm1568, %v1565, %v1567
        %v1575 = vadd.f32 %v1539, %v1561
        %v1576 = vadd.f32 %v1540, %v1569
        %v1577 = vadd.f32 %v1541, %v1565
        %v1578 = vadd.f32 %v1542, %v1570
        %v1579 = vld [vmem:[%s2 + $0x9] sm:$0x1]
        %v1580 = vlaneseq
        %v1581 = vshrl.u32 %v1580, 7
        %v1582 = vsub.s32 0, %v1581
        %v1583 = vrot.slane %v1579, %v1582
        %1585 = vrot.lane.b32.xlu0 %v1583, 16
        %v1586 = vpop.permute.xlu0 %1585
        %v1588 = vmul.f32 %v773, %v1586
        %v1589 = vmul.f32 %v1308, %v1586
        %v1590 = vmul.f32 %v775, %v1586
        %v1591 = vmul.f32 %v1309, %v1586
        %v1592 = vmul.f32 %v777, %v1586
        %v1593 = vmul.f32 %v1310, %v1586
        %v1600 = vrot.slane %v1588, 1
        %v1601 = vrot.slane %v1590, 1
        %v1602 = vsel %vm400, %v1600, %v1601
        %v1603 = vrot.slane %v1589, 1
        %v1604 = vrot.slane %v1591, 1
        %v1605 = vsel %vm400, %v1603, %v1604
        %v1606 = vrot.slane %v1592, 1
        %v1607 = vsel %vm400, %v1601, %v1606
        %v1608 = vrot.slane %v1593, 1
        %v1609 = vsel %vm400, %v1604, %v1608
        %1610 = vrot.lane.b32.xlu0 %v1602, 96
        %v1611 = vpop.permute.xlu0 %1610
        %1612 = vrot.lane.b32.xlu0 %v1605, 96
        %v1613 = vpop.permute.xlu0 %1612
        %1614 = vrot.lane.b32.xlu0 %v1607, 96
        %v1615 = vpop.permute.xlu0 %1614
        %1616 = vrot.lane.b32.xlu0 %v1609, 96
        %v1617 = vpop.permute.xlu0 %1616
        %v1618 = vsel %vm1568, %v1611, %v1613
        %v1619 = vsel %vm1568, %v1615, %v1617
        %v1624 = vadd.f32 %v1575, %v1611
        %v1625 = vadd.f32 %v1576, %v1618
        %v1626 = vadd.f32 %v1577, %v1615
        %v1627 = vadd.f32 %v1578, %v1619
        %v1628 = vld [vmem:[%s2 + $0xe] sm:$0x1]
        %v1629 = vlaneseq
        %v1630 = vshrl.u32 %v1629, 7
        %v1631 = vsub.s32 0, %v1630
        %v1632 = vrot.slane %v1628, %v1631
        %1634 = vrot.lane.b32.xlu0 %v1632, 16
        %v1635 = vpop.permute.xlu0 %1634
        %v1637 = vmul.f32 %v773, %v1635
        %v1638 = vmul.f32 %v1308, %v1635
        %v1639 = vmul.f32 %v775, %v1635
        %v1640 = vmul.f32 %v1309, %v1635
        %v1641 = vmul.f32 %v777, %v1635
        %v1642 = vmul.f32 %v1310, %v1635
        %v1649 = vrot.slane %v1637, 2
        %v1650 = vrot.slane %v1639, 2
        %v1651 = vsel %vm444, %v1649, %v1650
        %v1652 = vrot.slane %v1638, 2
        %v1653 = vrot.slane %v1640, 2
        %v1654 = vsel %vm444, %v1652, %v1653
        %v1655 = vrot.slane %v1641, 2
        %v1656 = vsel %vm444, %v1650, %v1655
        %v1657 = vrot.slane %v1642, 2
        %v1658 = vsel %vm444, %v1653, %v1657
        %1659 = vrot.lane.b32.xlu0 %v1651, 96
        %v1660 = vpop.permute.xlu0 %1659
        %1661 = vrot.lane.b32.xlu0 %v1654, 96
        %v1662 = vpop.permute.xlu0 %1661
        %1663 = vrot.lane.b32.xlu0 %v1656, 96
        %v1664 = vpop.permute.xlu0 %1663
        %1665 = vrot.lane.b32.xlu0 %v1658, 96
        %v1666 = vpop.permute.xlu0 %1665
        %v1667 = vsel %vm1568, %v1660, %v1662
        %v1668 = vsel %vm1568, %v1664, %v1666
        %v1673 = vadd.f32 %v1624, %v1660
        %v1674 = vadd.f32 %v1625, %v1667
        %v1675 = vadd.f32 %v1626, %v1664
        %v1676 = vadd.f32 %v1627, %v1668
        %v1677 = vld [vmem:[%s2 + $0x13] sm:$0x1]
        %v1678 = vlaneseq
        %v1679 = vshrl.u32 %v1678, 7
        %v1680 = vsub.s32 0, %v1679
        %v1681 = vrot.slane %v1677, %v1680
        %1683 = vrot.lane.b32.xlu0 %v1681, 16
        %v1684 = vpop.permute.xlu0 %1683
        %v1686 = vmul.f32 %v773, %v1684
        %v1687 = vmul.f32 %v1308, %v1684
        %v1688 = vmul.f32 %v775, %v1684
        %v1689 = vmul.f32 %v1309, %v1684
        %v1690 = vmul.f32 %v777, %v1684
        %v1691 = vmul.f32 %v1310, %v1684
        %v1698 = vrot.slane %v1686, 3
        %v1699 = vrot.slane %v1688, 3
        %v1700 = vsel %vm894, %v1698, %v1699
        %v1701 = vrot.slane %v1687, 3
        %v1702 = vrot.slane %v1689, 3
        %v1703 = vsel %vm894, %v1701, %v1702
        %v1704 = vrot.slane %v1690, 3
        %v1705 = vsel %vm894, %v1699, %v1704
        %v1706 = vrot.slane %v1691, 3
        %v1707 = vsel %vm894, %v1702, %v1706
        %1708 = vrot.lane.b32.xlu0 %v1700, 96
        %v1709 = vpop.permute.xlu0 %1708
        %1710 = vrot.lane.b32.xlu0 %v1703, 96
        %v1711 = vpop.permute.xlu0 %1710
        %1712 = vrot.lane.b32.xlu0 %v1705, 96
        %v1713 = vpop.permute.xlu0 %1712
        %1714 = vrot.lane.b32.xlu0 %v1707, 96
        %v1715 = vpop.permute.xlu0 %1714
        %v1716 = vsel %vm1568, %v1709, %v1711
        %v1717 = vsel %vm1568, %v1713, %v1715
        %v1722 = vadd.f32 %v1673, %v1709
        %v1723 = vadd.f32 %v1674, %v1716
        %v1724 = vadd.f32 %v1675, %v1713
        %v1725 = vadd.f32 %v1676, %v1717
        %v1726 = vld [vmem:[%s2 + $0x18] sm:$0x1]
        %v1727 = vlaneseq
        %v1728 = vshrl.u32 %v1727, 7
        %v1729 = vsub.s32 0, %v1728
        %v1730 = vrot.slane %v1726, %v1729
        %1732 = vrot.lane.b32.xlu0 %v1730, 16
        %v1733 = vpop.permute.xlu0 %1732
        %v1735 = vmul.f32 %v773, %v1733
        %v1736 = vmul.f32 %v1308, %v1733
        %v1737 = vmul.f32 %v775, %v1733
        %v1738 = vmul.f32 %v1309, %v1733
        %v1739 = vmul.f32 %v777, %v1733
        %v1740 = vmul.f32 %v1310, %v1733
        %v1747 = vrot.slane %v1735, 4
        %v1748 = vrot.slane %v1737, 4
        %v1749 = vsel %vm934, %v1747, %v1748
        %v1750 = vrot.slane %v1736, 4
        %v1751 = vrot.slane %v1738, 4
        %v1752 = vsel %vm934, %v1750, %v1751
        %v1753 = vrot.slane %v1739, 4
        %v1754 = vsel %vm934, %v1748, %v1753
        %v1755 = vrot.slane %v1740, 4
        %v1756 = vsel %vm934, %v1751, %v1755
        %1757 = vrot.lane.b32.xlu0 %v1749, 96
        %v1758 = vpop.permute.xlu0 %1757
        %1759 = vrot.lane.b32.xlu0 %v1752, 96
        %v1760 = vpop.permute.xlu0 %1759
        %1761 = vrot.lane.b32.xlu0 %v1754, 96
        %v1762 = vpop.permute.xlu0 %1761
        %1763 = vrot.lane.b32.xlu0 %v1756, 96
        %v1764 = vpop.permute.xlu0 %1763
        %v1765 = vsel %vm1568, %v1758, %v1760
        %v1766 = vsel %vm1568, %v1762, %v1764
        %v1771 = vadd.f32 %v1722, %v1758
        %v1772 = vadd.f32 %v1723, %v1765
        %v1773 = vadd.f32 %v1724, %v1762
        %v1774 = vadd.f32 %v1725, %v1766
        %v1775 = vlaneseq
        %v1776 = vshrl.u32 %v1775, 7
        %v1777 = vsub.s32 0, %v1776
        %v1778 = vrot.slane %v771, %v1777
        %1780 = vrot.lane.b32.xlu0 %v1778, 112
        %v1781 = vpop.permute.xlu0 %1780
        %v1783 = vadd.f32 %v1771, %v1781
        %v1784 = vadd.f32 %v1772, %v1781
        %v1785 = vadd.f32 %v1773, %v1781
        %v1786 = vadd.f32 %v1774, %v1781
        %v1787 = vmax.f32 %v1783, 0.0
        %v1788 = vmax.f32 %v1784, 0.0
        %v1789 = vmax.f32 %v1785, 0.0
        %v1790 = vmax.f32 %v1786, 0.0
        %1795 = vrot.lane.b32.xlu0 %v1787, 16
        %v1796 = vpop.permute.xlu0 %1795
        %1797 = vrot.lane.b32.xlu0 %v1788, 16
        %v1798 = vpop.permute.xlu0 %1797
        %1799 = vrot.lane.b32.xlu0 %v1789, 16
        %v1800 = vpop.permute.xlu0 %1799
        %1801 = vrot.lane.b32.xlu0 %v1790, 16
        %v1802 = vpop.permute.xlu0 %1801
        %v1803 = vsel %vm334, %v1796, %v1798
        %v1804 = vsel %vm334, %v1800, %v1802
        %s1807 = scalar_lea.vmem [#allocation3], 16
        %1808 = vst [vmem:[%s1807] sm:$0xff] %v1803
        %1809 = vst [vmem:[%s1807 + $0x8] sm:$0xff] %v1804
        %v1811 = vsel %vm334, 1.0, 0
        %1813 = vmatprep.subr.mxu0 0.0
        %1814 = vmatpush1.msra.mxu0 %v1803
        %1815 = vmatprep.subr.mxu0 0.0
        %1816 = vmatpush1.msra.mxu0 %v1804
        %1817 = vmatprep.subr.mxu0 0.0
        %1818 = vmatpush1.msra.mxu0 0.0
        %1819 = vmatprep.subr.mxu0 0.0
        %1820 = vmatpush1.msra.mxu0 0.0
        %1821 = vmatprep.subr.mxu0 0.0
        %1822 = vmatpush1.msra.mxu0 0.0
        %1823 = vmatprep.subr.mxu0 0.0
        %1824 = vmatpush1.msra.mxu0 0.0
        %1825 = vmatprep.subr.mxu0 0.0
        %1826 = vmatpush1.msra.mxu0 0.0
        %1827 = vmatprep.subr.mxu0 0.0
        %1828 = vmatpush1.msra.mxu0 0.0
        %1829 = vmatprep.subr.mxu0 0.0
        %1830 = vmatpush1.msra.mxu0 0.0
        %1831 = vmatprep.subr.mxu0 0.0
        %1832 = vmatpush1.msra.mxu0 0.0
        %1833 = vmatprep.subr.mxu0 0.0
        %1834 = vmatpush1.msra.mxu0 0.0
        %1835 = vmatprep.subr.mxu0 0.0
        %1836 = vmatpush1.msra.mxu0 0.0
        %1837 = vmatprep.subr.mxu0 0.0
        %1838 = vmatpush1.msra.mxu0 0.0
        %1839 = vmatprep.subr.mxu0 0.0
        %1840 = vmatpush1.msra.mxu0 0.0
        %1841 = vmatprep.subr.mxu0 0.0
        %1842 = vmatpush1.msra.mxu0 0.0
        %1843 = vmatprep.subr.mxu0 0.0
        %1844 = vmatpush1.msra.mxu0 0.0
        %1845 = vmatprep.subr.mxu0 0.0
        %1846 = vmatpush1.msra.mxu0 0.0
        %1847 = vmatprep.subr.mxu0 0.0
        %1848 = vmatpush1.msra.mxu0 0.0
        %1849 = vmatprep.subr.mxu0 0.0
        %1850 = vmatpush1.msra.mxu0 0.0
        %1851 = vmatprep.subr.mxu0 0.0
        %1852 = vmatpush1.msra.mxu0 0.0
        %1853 = vmatprep.subr.mxu0 0.0
        %1854 = vmatpush1.msra.mxu0 0.0
        %1855 = vmatprep.subr.mxu0 0.0
        %1856 = vmatpush1.msra.mxu0 0.0
        %1857 = vmatprep.subr.mxu0 0.0
        %1858 = vmatpush1.msra.mxu0 0.0
        %1859 = vmatprep.subr.mxu0 0.0
        %1860 = vmatpush1.msra.mxu0 0.0
        %1861 = vmatprep.subr.mxu0 0.0
        %1862 = vmatpush1.msra.mxu0 0.0
        %1863 = vmatprep.subr.mxu0 0.0
        %1864 = vmatpush1.msra.mxu0 0.0
        %1865 = vmatprep.subr.mxu0 0.0
        %1866 = vmatpush1.msra.mxu0 0.0
        %1867 = vmatprep.subr.mxu0 0.0
        %1868 = vmatpush1.msra.mxu0 0.0
        %1869 = vmatprep.subr.mxu0 0.0
        %1870 = vmatpush1.msra.mxu0 0.0
        %1871 = vmatprep.subr.mxu0 0.0
        %1872 = vmatpush1.msra.mxu0 0.0
        %1873 = vmatprep.subr.mxu0 0.0
        %1874 = vmatpush1.msra.mxu0 0.0
        %1875 = vmatprep.subr.mxu0 0.0
        %1876 = vmatpush1.msra.mxu0 0.0
        %1877 = vmatprep.mubr.f32.mxu0 0.0
        %1878 = vmatmul.mubr.f32.gmra.mrb[0].mxu0 %v1811
        %v1879 = vpop.f32.mrb[0].mxu0
        %v1880 = vadd.f32 0.0, %v1879
        %v1881 = vpop.f32.mrb[0].mxu0
        %1882 = vdwg.mxu0
        %v1883 = vrot.slane %v737, 1
        %v1884 = vrot.slane %v739, 1
        %v1885 = vsel %vm400, %v1883, %v1884
        %v1886 = vrot.slane %v738, 1
        %v1887 = vrot.slane %v740, 1
        %v1888 = vsel %vm400, %v1886, %v1887
        %v1889 = vrot.slane %v741, 1
        %v1890 = vsel %vm400, %v1884, %v1889
        %v1891 = vrot.slane %v742, 1
        %v1892 = vsel %vm400, %v1887, %v1891
        %1893 = vrot.lane.b32.xlu0 %v1885, 8
        %v1894 = vpop.permute.xlu0 %1893
        %1895 = vrot.lane.b32.xlu0 %v1888, 8
        %v1896 = vpop.permute.xlu0 %1895
        %1897 = vrot.lane.b32.xlu0 %v1890, 8
        %v1898 = vpop.permute.xlu0 %1897
        %1899 = vrot.lane.b32.xlu0 %v1892, 8
        %v1900 = vpop.permute.xlu0 %1899
        %v1901 = vsel %vm761, %v1894, %v1896
        %v1902 = vsel %vm761, %v1898, %v1900
        %1905 = vmatprep.subr.mxu0 0.0
        %1906 = vmatpush1.msra.mxu0 %v1901
        %1907 = vmatprep.subr.mxu0 0.0
        %1908 = vmatpush1.msra.mxu0 %v1902
        %1909 = vmatprep.subr.mxu0 0.0
        %1910 = vmatpush1.msra.mxu0 0.0
        %1911 = vmatprep.subr.mxu0 0.0
        %1912 = vmatpush1.msra.mxu0 0.0
        %1913 = vmatprep.subr.mxu0 0.0
        %1914 = vmatpush1.msra.mxu0 0.0
        %1915 = vmatprep.subr.mxu0 0.0
        %1916 = vmatpush1.msra.mxu0 0.0
        %1917 = vmatprep.subr.mxu0 0.0
        %1918 = vmatpush1.msra.mxu0 0.0
        %1919 = vmatprep.subr.mxu0 0.0
        %1920 = vmatpush1.msra.mxu0 0.0
        %1921 = vmatprep.subr.mxu0 0.0
        %1922 = vmatpush1.msra.mxu0 0.0
        %1923 = vmatprep.subr.mxu0 0.0
        %1924 = vmatpush1.msra.mxu0 0.0
        %1925 = vmatprep.subr.mxu0 0.0
        %1926 = vmatpush1.msra.mxu0 0.0
        %1927 = vmatprep.subr.mxu0 0.0
        %1928 = vmatpush1.msra.mxu0 0.0
        %1929 = vmatprep.subr.mxu0 0.0
        %1930 = vmatpush1.msra.mxu0 0.0
        %1931 = vmatprep.subr.mxu0 0.0
        %1932 = vmatpush1.msra.mxu0 0.0
        %1933 = vmatprep.subr.mxu0 0.0
        %1934 = vmatpush1.msra.mxu0 0.0
        %1935 = vmatprep.subr.mxu0 0.0
        %1936 = vmatpush1.msra.mxu0 0.0
        %1937 = vmatprep.subr.mxu0 0.0
        %1938 = vmatpush1.msra.mxu0 0.0
        %1939 = vmatprep.subr.mxu0 0.0
        %1940 = vmatpush1.msra.mxu0 0.0
        %1941 = vmatprep.subr.mxu0 0.0
        %1942 = vmatpush1.msra.mxu0 0.0
        %1943 = vmatprep.subr.mxu0 0.0
        %1944 = vmatpush1.msra.mxu0 0.0
        %1945 = vmatprep.subr.mxu0 0.0
        %1946 = vmatpush1.msra.mxu0 0.0
        %1947 = vmatprep.subr.mxu0 0.0
        %1948 = vmatpush1.msra.mxu0 0.0
        %1949 = vmatprep.subr.mxu0 0.0
        %1950 = vmatpush1.msra.mxu0 0.0
        %1951 = vmatprep.subr.mxu0 0.0
        %1952 = vmatpush1.msra.mxu0 0.0
        %1953 = vmatprep.subr.mxu0 0.0
        %1954 = vmatpush1.msra.mxu0 0.0
        %1955 = vmatprep.subr.mxu0 0.0
        %1956 = vmatpush1.msra.mxu0 0.0
        %1957 = vmatprep.subr.mxu0 0.0
        %1958 = vmatpush1.msra.mxu0 0.0
        %1959 = vmatprep.subr.mxu0 0.0
        %1960 = vmatpush1.msra.mxu0 0.0
        %1961 = vmatprep.subr.mxu0 0.0
        %1962 = vmatpush1.msra.mxu0 0.0
        %1963 = vmatprep.subr.mxu0 0.0
        %1964 = vmatpush1.msra.mxu0 0.0
        %1965 = vmatprep.subr.mxu0 0.0
        %1966 = vmatpush1.msra.mxu0 0.0
        %1967 = vmatprep.subr.mxu0 0.0
        %1968 = vmatpush1.msra.mxu0 0.0
        %1969 = vmatprep.mubr.f32.mxu0 0.0
        %1970 = vmatmul.mubr.f32.gmra.mrb[0].mxu0 %v1811
        %v1971 = vpop.f32.mrb[0].mxu0
        %v1972 = vadd.f32 %v1880, %v1971
        %v1973 = vpop.f32.mrb[0].mxu0
        %1974 = vdwg.mxu0
        %1976 = vrot.lane.b32.xlu0 %v1972, 120
        %v1977 = vpop.permute.xlu0 %1976
        %v1979 = vadd.f32 %v1972, %v1977
        %1981 = vrot.lane.b32.xlu0 %v1979, 112
        %v1982 = vpop.permute.xlu0 %1981
        %v1984 = vadd.f32 %v1979, %v1982
        %1986 = vrot.lane.b32.xlu0 %v1984, 96
        %v1987 = vpop.permute.xlu0 %1986
        %v1989 = vadd.f32 %v1984, %v1987
        %1991 = vrot.lane.b32.xlu0 %v1989, 64
        %v1992 = vpop.permute.xlu0 %1991
        %v1994 = vadd.f32 %v1989, %v1992
        %v1995 = vadd.f32 %v1994, 0.0
        %v1996 = vmul.f32 %v1995, 0.00390625
        %v1997 = vld [vmem:[#allocation5] sm:$0xff]
        %v1998 = vld [vmem:[%s5] sm:$0x1]
        %v2000 = vsel %vm761, %v1996, 0
        %2002 = vmatprep.subr.mxu0 0.0
        %2003 = vmatpush1.msra.mxu0 %v1997
        %2004 = vmatprep.subr.mxu0 0.0
        %2005 = vmatpush1.msra.mxu0 0.0
        %2006 = vmatprep.subr.mxu0 0.0
        %2007 = vmatpush1.msra.mxu0 0.0
        %2008 = vmatprep.subr.mxu0 0.0
        %2009 = vmatpush1.msra.mxu0 0.0
        %2010 = vmatprep.subr.mxu0 0.0
        %2011 = vmatpush1.msra.mxu0 0.0
        %2012 = vmatprep.subr.mxu0 0.0
        %2013 = vmatpush1.msra.mxu0 0.0
        %2014 = vmatprep.subr.mxu0 0.0
        %2015 = vmatpush1.msra.mxu0 0.0
        %2016 = vmatprep.subr.mxu0 0.0
        %2017 = vmatpush1.msra.mxu0 0.0
        %2018 = vmatprep.subr.mxu0 0.0
        %2019 = vmatpush1.msra.mxu0 0.0
        %2020 = vmatprep.subr.mxu0 0.0
        %2021 = vmatpush1.msra.mxu0 0.0
        %2022 = vmatprep.subr.mxu0 0.0
        %2023 = vmatpush1.msra.mxu0 0.0
        %2024 = vmatprep.subr.mxu0 0.0
        %2025 = vmatpush1.msra.mxu0 0.0
        %2026 = vmatprep.subr.mxu0 0.0
        %2027 = vmatpush1.msra.mxu0 0.0
        %2028 = vmatprep.subr.mxu0 0.0
        %2029 = vmatpush1.msra.mxu0 0.0
        %2030 = vmatprep.subr.mxu0 0.0
        %2031 = vmatpush1.msra.mxu0 0.0
        %2032 = vmatprep.subr.mxu0 0.0
        %2033 = vmatpush1.msra.mxu0 0.0
        %2034 = vmatprep.subr.mxu0 0.0
        %2035 = vmatpush1.msra.mxu0 0.0
        %2036 = vmatprep.subr.mxu0 0.0
        %2037 = vmatpush1.msra.mxu0 0.0
        %2038 = vmatprep.subr.mxu0 0.0
        %2039 = vmatpush1.msra.mxu0 0.0
        %2040 = vmatprep.subr.mxu0 0.0
        %2041 = vmatpush1.msra.mxu0 0.0
        %2042 = vmatprep.subr.mxu0 0.0
        %2043 = vmatpush1.msra.mxu0 0.0
        %2044 = vmatprep.subr.mxu0 0.0
        %2045 = vmatpush1.msra.mxu0 0.0
        %2046 = vmatprep.subr.mxu0 0.0
        %2047 = vmatpush1.msra.mxu0 0.0
        %2048 = vmatprep.subr.mxu0 0.0
        %2049 = vmatpush1.msra.mxu0 0.0
        %2050 = vmatprep.subr.mxu0 0.0
        %2051 = vmatpush1.msra.mxu0 0.0
        %2052 = vmatprep.subr.mxu0 0.0
        %2053 = vmatpush1.msra.mxu0 0.0
        %2054 = vmatprep.subr.mxu0 0.0
        %2055 = vmatpush1.msra.mxu0 0.0
        %2056 = vmatprep.subr.mxu0 0.0
        %2057 = vmatpush1.msra.mxu0 0.0
        %2058 = vmatprep.subr.mxu0 0.0
        %2059 = vmatpush1.msra.mxu0 0.0
        %2060 = vmatprep.subr.mxu0 0.0
        %2061 = vmatpush1.msra.mxu0 0.0
        %2062 = vmatprep.subr.mxu0 0.0
        %2063 = vmatpush1.msra.mxu0 0.0
        %2064 = vmatprep.subr.mxu0 0.0
        %2065 = vmatpush1.msra.mxu0 0.0
        %2066 = vmatprep.mubr.f32.mxu0 0.0
        %2067 = vmatmul.mubr.f32.gmra.mrb[0].mxu0 %v2000
        %v2068 = vpop.f32.mrb[0].mxu0
        %v2069 = vadd.f32 %v1998, %v2068
        %v2070 = vpop.f32.mrb[0].mxu0
        %2071 = vdwg.mxu0
        %v2072 = vld [vmem:[%s6] sm:$0xff]
        %v2073 = vld [vmem:[%s6 + $0x8] sm:$0xff]
        %v2074 = vld [vmem:[%s6 + $0x10] sm:$0xff]
        %v2075 = vld [vmem:[%s6 + $0x18] sm:$0xff]
        %v2076 = vld [vmem:[%s7] sm:$0x1]
        %vm2077 = vcmask 261120
        %v2079 = vsel %vm2077, %v2069, 0
        %2081 = vmatprep.subr.mxu0 0.0
        %2082 = vmatpush1.msra.mxu0 %v2072
        %2083 = vmatprep.subr.mxu0 0.0
        %2084 = vmatpush1.msra.mxu0 %v2073
        %2085 = vmatprep.subr.mxu0 0.0
        %2086 = vmatpush1.msra.mxu0 %v2074
        %2087 = vmatprep.subr.mxu0 0.0
        %2088 = vmatpush1.msra.mxu0 %v2075
        %2089 = vmatprep.subr.mxu0 0.0
        %2090 = vmatpush1.msra.mxu0 0.0
        %2091 = vmatprep.subr.mxu0 0.0
        %2092 = vmatpush1.msra.mxu0 0.0
        %2093 = vmatprep.subr.mxu0 0.0
        %2094 = vmatpush1.msra.mxu0 0.0
        %2095 = vmatprep.subr.mxu0 0.0
        %2096 = vmatpush1.msra.mxu0 0.0
        %2097 = vmatprep.subr.mxu0 0.0
        %2098 = vmatpush1.msra.mxu0 0.0
        %2099 = vmatprep.subr.mxu0 0.0
        %2100 = vmatpush1.msra.mxu0 0.0
        %2101 = vmatprep.subr.mxu0 0.0
        %2102 = vmatpush1.msra.mxu0 0.0
        %2103 = vmatprep.subr.mxu0 0.0
        %2104 = vmatpush1.msra.mxu0 0.0
        %2105 = vmatprep.subr.mxu0 0.0
        %2106 = vmatpush1.msra.mxu0 0.0
        %2107 = vmatprep.subr.mxu0 0.0
        %2108 = vmatpush1.msra.mxu0 0.0
        %2109 = vmatprep.subr.mxu0 0.0
        %2110 = vmatpush1.msra.mxu0 0.0
        %2111 = vmatprep.subr.mxu0 0.0
        %2112 = vmatpush1.msra.mxu0 0.0
        %2113 = vmatprep.subr.mxu0 0.0
        %2114 = vmatpush1.msra.mxu0 0.0
        %2115 = vmatprep.subr.mxu0 0.0
        %2116 = vmatpush1.msra.mxu0 0.0
        %2117 = vmatprep.subr.mxu0 0.0
        %2118 = vmatpush1.msra.mxu0 0.0
        %2119 = vmatprep.subr.mxu0 0.0
        %2120 = vmatpush1.msra.mxu0 0.0
        %2121 = vmatprep.subr.mxu0 0.0
        %2122 = vmatpush1.msra.mxu0 0.0
        %2123 = vmatprep.subr.mxu0 0.0
        %2124 = vmatpush1.msra.mxu0 0.0
        %2125 = vmatprep.subr.mxu0 0.0
        %2126 = vmatpush1.msra.mxu0 0.0
        %2127 = vmatprep.subr.mxu0 0.0
        %2128 = vmatpush1.msra.mxu0 0.0
        %2129 = vmatprep.subr.mxu0 0.0
        %2130 = vmatpush1.msra.mxu0 0.0
        %2131 = vmatprep.subr.mxu0 0.0
        %2132 = vmatpush1.msra.mxu0 0.0
        %2133 = vmatprep.subr.mxu0 0.0
        %2134 = vmatpush1.msra.mxu0 0.0
        %2135 = vmatprep.subr.mxu0 0.0
        %2136 = vmatpush1.msra.mxu0 0.0
        %2137 = vmatprep.subr.mxu0 0.0
        %2138 = vmatpush1.msra.mxu0 0.0
        %2139 = vmatprep.subr.mxu0 0.0
        %2140 = vmatpush1.msra.mxu0 0.0
        %2141 = vmatprep.subr.mxu0 0.0
        %2142 = vmatpush1.msra.mxu0 0.0
        %2143 = vmatprep.subr.mxu0 0.0
        %2144 = vmatpush1.msra.mxu0 0.0
        %2145 = vmatprep.mubr.f32.mxu0 0.0
        %2146 = vmatmul.mubr.f32.gmra.mrb[0].mxu0 %v2079
        %v2147 = vpop.f32.mrb[0].mxu0
        %v2148 = vadd.f32 %v2076, %v2147
        %v2149 = vpop.f32.mrb[0].mxu0
        %2150 = vdwg.mxu0
        %s2151 = scalar_lea.vmem %s6, 32
        %v2152 = vld [vmem:[%s2151] sm:$0xff]
        %v2153 = vld [vmem:[%s2151 + $0x8] sm:$0xff]
        %v2154 = vld [vmem:[%s2151 + $0x10] sm:$0xff]
        %v2155 = vld [vmem:[%s2151 + $0x18] sm:$0xff]
        %v2156 = vld [vmem:[%s7 + $0x1] sm:$0x1]
        %2157 = vmatprep.subr.mxu0 0.0
        %2158 = vmatpush1.msra.mxu0 %v2152
        %2159 = vmatprep.subr.mxu0 0.0
        %2160 = vmatpush1.msra.mxu0 %v2153
        %2161 = vmatprep.subr.mxu0 0.0
        %2162 = vmatpush1.msra.mxu0 %v2154
        %2163 = vmatprep.subr.mxu0 0.0
        %2164 = vmatpush1.msra.mxu0 %v2155
        %2165 = vmatprep.subr.mxu0 0.0
        %2166 = vmatpush1.msra.mxu0 0.0
        %2167 = vmatprep.subr.mxu0 0.0
        %2168 = vmatpush1.msra.mxu0 0.0
        %2169 = vmatprep.subr.mxu0 0.0
        %2170 = vmatpush1.msra.mxu0 0.0
        %2171 = vmatprep.subr.mxu0 0.0
        %2172 = vmatpush1.msra.mxu0 0.0
        %2173 = vmatprep.subr.mxu0 0.0
        %2174 = vmatpush1.msra.mxu0 0.0
        %2175 = vmatprep.subr.mxu0 0.0
        %2176 = vmatpush1.msra.mxu0 0.0
        %2177 = vmatprep.subr.mxu0 0.0
        %2178 = vmatpush1.msra.mxu0 0.0
        %2179 = vmatprep.subr.mxu0 0.0
        %2180 = vmatpush1.msra.mxu0 0.0
        %2181 = vmatprep.subr.mxu0 0.0
        %2182 = vmatpush1.msra.mxu0 0.0
        %2183 = vmatprep.subr.mxu0 0.0
        %2184 = vmatpush1.msra.mxu0 0.0
        %2185 = vmatprep.subr.mxu0 0.0
        %2186 = vmatpush1.msra.mxu0 0.0
        %2187 = vmatprep.subr.mxu0 0.0
        %2188 = vmatpush1.msra.mxu0 0.0
        %2189 = vmatprep.subr.mxu0 0.0
        %2190 = vmatpush1.msra.mxu0 0.0
        %2191 = vmatprep.subr.mxu0 0.0
        %2192 = vmatpush1.msra.mxu0 0.0
        %2193 = vmatprep.subr.mxu0 0.0
        %2194 = vmatpush1.msra.mxu0 0.0
        %2195 = vmatprep.subr.mxu0 0.0
        %2196 = vmatpush1.msra.mxu0 0.0
        %2197 = vmatprep.subr.mxu0 0.0
        %2198 = vmatpush1.msra.mxu0 0.0
        %2199 = vmatprep.subr.mxu0 0.0
        %2200 = vmatpush1.msra.mxu0 0.0
        %2201 = vmatprep.subr.mxu0 0.0
        %2202 = vmatpush1.msra.mxu0 0.0
        %2203 = vmatprep.subr.mxu0 0.0
        %2204 = vmatpush1.msra.mxu0 0.0
        %2205 = vmatprep.subr.mxu0 0.0
        %2206 = vmatpush1.msra.mxu0 0.0
        %2207 = vmatprep.subr.mxu0 0.0
        %2208 = vmatpush1.msra.mxu0 0.0
        %2209 = vmatprep.subr.mxu0 0.0
        %2210 = vmatpush1.msra.mxu0 0.0
        %2211 = vmatprep.subr.mxu0 0.0
        %2212 = vmatpush1.msra.mxu0 0.0
        %2213 = vmatprep.subr.mxu0 0.0
        %2214 = vmatpush1.msra.mxu0 0.0
        %2215 = vmatprep.subr.mxu0 0.0
        %2216 = vmatpush1.msra.mxu0 0.0
        %2217 = vmatprep.subr.mxu0 0.0
        %2218 = vmatpush1.msra.mxu0 0.0
        %2219 = vmatprep.subr.mxu0 0.0
        %2220 = vmatpush1.msra.mxu0 0.0
        %2221 = vmatprep.mubr.f32.mxu0 0.0
        %2222 = vmatmul.mubr.f32.gmra.mrb[0].mxu0 %v2079
        %v2223 = vpop.f32.mrb[0].mxu0
        %v2224 = vadd.f32 %v2156, %v2223
        %v2225 = vpop.f32.mrb[0].mxu0
        %2226 = vdwg.mxu0
        %v2227 = vmax.f32 %v2148, %v2224
        %v2228 = vsub.f32 %v2148, %v2227
        %v2229 = vmul.f32 %v2228, 1.442695
        %v2230 = vpow.pop %v2229
        %v2231 = vsub.f32 %v2224, %v2227
        %v2232 = vmul.f32 %v2231, 1.442695
        %v2233 = vpow.pop %v2232
        %v2234 = vadd.f32 %v2230, %v2233
        %v2235 = vrcp.pop %v2234
        %v2236 = vmul.f32 %v2234, %v2235
        %v2237 = vsub.f32 2.0, %v2236
        %v2238 = vmul.f32 %v2235, %v2237
        %v2239 = vmul.f32 %v2230, %v2238
        %vm2240 = vcmask 57344
        %2241 = vst.msk [vmem:[#allocation4] sm:$0x1] %vm2240, %v2239
        %v2242 = vld [vmem:[#allocation4] sm:$0x1]
        %2244 = vrot.lane.b32.xlu0 %v2242, 8
        %v2245 = vpop.permute.xlu0 %2244
        %vm2247 = vcmask 122944
        %2248 = vst.msk [vmem:[#allocation4] sm:$0x1] %vm2247, %v2245
        %v2249 = vld [vmem:[#allocation4] sm:$0x1]
        %2251 = vrot.lane.b32.xlu0 %v2249, 16
        %v2252 = vpop.permute.xlu0 %2251
        %vm2254 = vcmask 254080
        %2255 = vst.msk [vmem:[#allocation4] sm:$0x1] %vm2254, %v2252
        %v2256 = vld [vmem:[#allocation4] sm:$0x1]
        %2258 = vrot.lane.b32.xlu0 %v2256, 32
        %v2259 = vpop.permute.xlu0 %2258
        %vm2261 = vcmask 516352
        %2262 = vst.msk [vmem:[#allocation4] sm:$0x1] %vm2261, %v2259
        %v2263 = vld [vmem:[#allocation4] sm:$0x1]
        %2265 = vrot.lane.b32.xlu0 %v2263, 64
        %v2266 = vpop.permute.xlu0 %2265
        %vm2268 = vcmask 1040896
        %2269 = vst.msk [vmem:[#allocation4] sm:$0x1] %vm2268, %v2266
        %v2270 = vmul.f32 %v2233, %v2238
        %2271 = vst.msk [vmem:[#allocation4 + $0x1] sm:$0x1] %vm2240, %v2270
        %v2272 = vld [vmem:[#allocation4 + $0x1] sm:$0x1]
        %2274 = vrot.lane.b32.xlu0 %v2272, 8
        %v2275 = vpop.permute.xlu0 %2274
        %2277 = vst.msk [vmem:[#allocation4 + $0x1] sm:$0x1] %vm2247, %v2275
        %v2278 = vld [vmem:[#allocation4 + $0x1] sm:$0x1]
        %2280 = vrot.lane.b32.xlu0 %v2278, 16
        %v2281 = vpop.permute.xlu0 %2280
        %2283 = vst.msk [vmem:[#allocation4 + $0x1] sm:$0x1] %vm2254, %v2281
        %v2284 = vld [vmem:[#allocation4 + $0x1] sm:$0x1]
        %2286 = vrot.lane.b32.xlu0 %v2284, 32
        %v2287 = vpop.permute.xlu0 %2286
        %2289 = vst.msk [vmem:[#allocation4 + $0x1] sm:$0x1] %vm2261, %v2287
        %v2290 = vld [vmem:[#allocation4 + $0x1] sm:$0x1]
        %2292 = vrot.lane.b32.xlu0 %v2290, 64
        %v2293 = vpop.permute.xlu0 %2292
        %2295 = vst.msk [vmem:[#allocation4 + $0x1] sm:$0x1] %vm2268, %v2293
        %v2296 = vld [vmem:[#allocation3] sm:$0xff]
        %v2297 = vld [vmem:[#allocation3 + $0x8] sm:$0xff]
        %v2298 = vld [vmem:[#allocation4] sm:$0x1]
        %v2299 = vlaneseq
        %v2300 = vshrl.u32 %v2299, 7
        %v2301 = vsub.s32 0, %v2300
        %v2302 = vrot.slane %v2298, %v2301
        %v2303 = vmul.f32 %v2296, %v2302
        %v2304 = vmul.f32 %v2297, %v2302
        %v2305 = vadd.f32 %v2303, 0.0
        %v2306 = vadd.f32 %v2304, 0.0
        %v2307 = vld [vmem:[%s1807] sm:$0xff]
        %v2308 = vld [vmem:[%s1807 + $0x8] sm:$0xff]
        %v2309 = vld [vmem:[#allocation4 + $0x1] sm:$0x1]
        %v2310 = vlaneseq
        %v2311 = vshrl.u32 %v2310, 7
        %v2312 = vsub.s32 0, %v2311
        %v2313 = vrot.slane %v2309, %v2312
        %v2314 = vmul.f32 %v2307, %v2313
        %v2315 = vmul.f32 %v2308, %v2313
        %v2316 = vadd.f32 %v2305, %v2314
        %v2317 = vadd.f32 %v2306, %v2315
        %2318 = vst [vmem:[%s311] sm:$0xff] %v2316
        %2319 = vst [vmem:[%s311 + $0x8] sm:$0xff] %v2317
        %s2320 = sand.u32 %s204, 1
        %s2321 = scalar_lea.sflag [#allocation7], %s2320
        %s2322 = sand.u32 %s204, 1
        %s2323 = smul.addr %s2322, 16
        %s2324 = scalar_lea.vmem [#allocation8], %s2323
        // Predicated region
        $region57: #{tpu_custom_call.1} parent=51 // pred_check
          %p2325 = pneg %p214
        $region58: #{tpu_custom_call.1} parent=51 // pred_check_branch
          %2327 = sbr.rel (%p2325) target = $region60
        $region59: #{tpu_custom_call.1} parent=51 // pred_region
          %s2329 = ssub.s32 256, 256
          %2330 = vsyncadd %s2321, %s2329
          %s2331 = smul.addr %s23, 2
          %s2332 = smul.addr %s2331, 128
          %s2333 = scalar_lea.hbm %s8, %s2332
          %s2334 = sshll.u32 %s2324, 4
          %s2335 = int_to_ptr.vmem [resolvable:$true] %s2334
          %2340 = dma.vmem_to_hbm [thread:$0]  %s2335, 256, %s2333, %s2321, 128, 128, 8
        $region60: #{tpu_custom_call.1} parent=51 // pred_fallthru
          _
      $region52: #{tpu_custom_call.1} parent=5 // pred_fallthru
        _
      %p2341 = scmp.le.s32.totalorder 2, %s18
      // Predicated region
      $region61: #{tpu_custom_call.1} parent=5 // pred_check
        %p2342 = pneg %p2341
      $region62: #{tpu_custom_call.1} parent=5 // pred_check_branch
        %2344 = sbr.rel (%p2342) target = $region64
      $region63: #{tpu_custom_call.1} parent=5 // pred_region
        %s2345 = ssub.s32 %s18, 2
        // Predicated region
        $region65: #{tpu_custom_call.1} parent=63 // pred_check
          %p2346 = pneg %p220
        $region66: #{tpu_custom_call.1} parent=63 // pred_check_branch
          %2348 = sbr.rel (%p2346) target = $region68
        $region67: #{tpu_custom_call.1} parent=63 // pred_region
          %s2349 = sand.u32 %s205, 1
          %s2350 = scalar_lea.sflag [#allocation7], %s2349
          %s2351 = sand.u32 %s205, 1
          %s2352 = smul.addr %s2351, 16
          %s2353 = scalar_lea.vmem [#allocation8], %s2352
          %2354 = dma.done %s2350, 256
        $region68: #{tpu_custom_call.1} parent=63 // pred_fallthru
          _
      $region64: #{tpu_custom_call.1} parent=5 // pred_fallthru
        _
    $region6: #{tpu_custom_call.1} parent=1 // loop_footer
      %s22 = sadd.s32 1, %s18
    $region7: #{tpu_custom_call.1} parent=1 // loop_footer_branch
      %17 = sbr.rel target = $region3
    $region8: #{tpu_custom_call.1} parent=1 // loop_exit
      _
    %2355 = vsyncpa [#allocation6], 1
    %s2356 = scalar_lea.sflag [#allocation6], 1
    %2357 = vsyncpa %s2356, 1
    %2358 = vsyncpa [#allocation7], 1
    %s2359 = scalar_lea.sflag [#allocation7], 1
    %2360 = vsyncpa %s2359, 1

</llo_original>
